<compile_context>
chip_gen: v7x
topology: tpu7x:2x2x1
jax: 0.10.0
libtpu: 0.0.40
codegen_flags: <defaults>
</compile_context>

<pallas_src>
import functools

import jax
import jax.numpy as jnp
from jax.experimental import pallas as pl
from jax.experimental.pallas import tpu as pltpu

L = 36
D_IN = 2 * L            # 72
D_H1 = (2 * L) // 3     # 24
D_H2 = (4 * L) // 9     # 16
D_H3 = (2 * L) // 3     # 24
D_OUT = L               # 36

_DIMS_IN = (D_IN, D_H1, D_H2, D_H3)
_DIMS_OUT = (D_H1, D_H2, D_H3, D_OUT)

# Packed-parameter layout: transposed weights stacked by rows, then bias rows.
# All row offsets are multiples of 8 (clean sublane slicing).
_W_OFFS = (0, D_IN, D_IN + D_H1, D_IN + D_H1 + D_H2)      # 0, 72, 96, 112
_B_OFFS = (136, 144, 152, 160)                             # one 8-aligned row each
_ROWS = 168
_COLS = max(_DIMS_OUT)                                     # 36

_TILE_QUANTUM = 256     # sublane-aligned tile granularity; keeps per-step DMAs fat


def _round_up(n, m):
    return ((n + m - 1) // m) * m


def _choose_tile(B, batch_tile):
    """Pick (tile, padded_batch, grid_steps).

    * tile is a multiple of _TILE_QUANTUM (fat, aligned DMAs),
    * padding waste is bounded (B_pad stays close to round_up(B, 256) instead
      of round_up(B, tile)),
    * the grid gets >= 2 steps whenever the batch allows it, so v7x's two
      TensorCores both get work under dimension_semantics=("parallel",).
    """
    B_q = _round_up(B, _TILE_QUANTUM)
    bt_req = max(_TILE_QUANTUM, _round_up(batch_tile, _TILE_QUANTUM))
    steps = max(-(-B_q // bt_req), 2 if B_q >= 2 * _TILE_QUANTUM else 1)
    bt = _round_up(-(-B_q // steps), _TILE_QUANTUM)
    return bt, bt * steps, steps


def _dnn_kernel(x_ref, p_ref, o_ref):
    """Fused 4-layer MLP on one (bt, 72) batch tile; all math in f32."""
    h = x_ref[...]                                                    # (bt, 72) f32
    for i in range(4):                                                # unrolled at trace time
        d_in, d_out = _DIMS_IN[i], _DIMS_OUT[i]
        wt = p_ref[_W_OFFS[i]:_W_OFFS[i] + d_in, 0:d_out]            # (d_in, d_out), static slice
        b = p_ref[_B_OFFS[i]:_B_OFFS[i] + 1, 0:d_out]                # (1, d_out)
        y = jnp.dot(h, wt, preferred_element_type=jnp.float32) + b
        h = jnp.maximum(y, 0.0)                                       # activa() -> ReLU
    o_ref[...] = h.astype(o_ref.dtype)


@functools.partial(jax.jit, static_argnames=("batch_tile",))
def dnn_forward(x, packed_params, *, batch_tile=8192):
    """x: [B, 2L] float. packed_params: (168, 36) f32 from pack_params().
    Returns [B, L] float32, identical math to torch: relu(x @ W.T + b) x4."""
    B, d_in = x.shape
    assert d_in == D_IN

    bt, B_pad, steps = _choose_tile(B, batch_tile)

    x_f32 = x.astype(jnp.float32)
    if B_pad != B:
        x_f32 = jnp.pad(x_f32, ((0, B_pad - B), (0, 0)))              # padded rows sliced off below

    out = pl.pallas_call(
        _dnn_kernel,
        out_shape=jax.ShapeDtypeStruct((B_pad, D_OUT), jnp.float32),
        grid_spec=pl.GridSpec(
            grid=(steps,),
            in_specs=[
                pl.BlockSpec((bt, D_IN), lambda i: (i, 0)),           # contiguous x tile
                pl.BlockSpec((_ROWS, _COLS), lambda i: (0, 0)),       # packed params, resident
            ],
            out_specs=pl.BlockSpec((bt, D_OUT), lambda i: (i, 0)),    # direct (B_pad, 36) write
        ),
        compiler_params=pltpu.CompilerParams(
            dimension_semantics=("parallel",),                        # megacore-shardable on v7x
        ),
    )(x_f32, packed_params)

    return out[:B]


def init_params(key):
    """torch.nn.Linear default init: U(-1/sqrt(fan_in), 1/sqrt(fan_in)).
    Weights in torch (out_features, in_features) layout; biases (out_features,)."""
    dims = [(D_IN, D_H1), (D_H1, D_H2), (D_H2, D_H3), (D_H3, D_OUT)]
    params = {}
    keys = jax.random.split(key, 2 * len(dims))
    for idx, (d_in, d_out) in enumerate(dims):
        bound = 1.0 / (d_in ** 0.5)
        params[f"w{idx + 1}"] = jax.random.uniform(
            keys[2 * idx], (d_out, d_in), minval=-bound, maxval=bound, dtype=jnp.float32)
        params[f"b{idx + 1}"] = jax.random.uniform(
            keys[2 * idx + 1], (d_out,), minval=-bound, maxval=bound, dtype=jnp.float32)
    return params


def pack_params(params):
    """Pack the four torch-layout (out, in) weights TRANSPOSED plus biases into
    one (168, 36) f32 buffer: rows [_W_OFFS[i], +d_in) x cols [0, d_out) hold
    W_i^T; row _B_OFFS[i], cols [0, d_out) hold bias_i."""
    packed = jnp.zeros((_ROWS, _COLS), jnp.float32)
    for i in range(4):
        w, b = params[f"w{i + 1}"], params[f"b{i + 1}"]               # w: (out, in)
        d_out, d_in = w.shape
        packed = packed.at[_W_OFFS[i]:_W_OFFS[i] + d_in, 0:d_out].set(w.T)
        packed = packed.at[_B_OFFS[i], 0:d_out].set(b)
    return packed


def dnn_reference(x, params):
    """Pure-JAX replica of the PyTorch forward: relu(x @ W.T + b), four times."""
    h = x
    for i in range(1, 5):
        h = jnp.maximum(
            jnp.dot(h, params[f"w{i}"].T, precision="highest") + params[f"b{i}"], 0.0)
    return h


if __name__ == "__main__":
    key = jax.random.PRNGKey(0)
    k_params, k_x = jax.random.split(key)

    params = init_params(k_params)
    packed = pack_params(params)

    B = 1000  # ragged on purpose: exercises wrapper padding and a 2-step grid
    x = jax.random.normal(k_x, (B, D_IN), dtype=jnp.float32)

    out = jax.block_until_ready(dnn_forward(x, packed))
    assert out.shape == (B, D_OUT)

    ref = dnn_reference(x, params)
    assert jnp.allclose(out, ref, atol=1e-3, rtol=1e-3), "mismatch vs f32 reference"

    print("KERNEL_OK")
</pallas_src>

<mosaic_0001>
module attributes {stable_mosaic.version = 11 : i64} {
  func.func @_dnn_kernel(%arg0: i32, %arg1: memref<512x72xf32, #tpu.memory_space<vmem>>, %arg2: memref<168x36xf32, #tpu.memory_space<vmem>>, %arg3: memref<512x36xf32, #tpu.memory_space<vmem>>) attributes {dimension_semantics = [#tpu.dimension_semantics<parallel>], iteration_bounds = array<i64: 2>, scalar_prefetch = 0 : i64, scratch_operands = 0 : i64, tpu.core_type = #tpu.core_type<tc>, window_params = [{transform_indices = @transform_0, window_bounds = array<i64: 512, 72>}, {pipeline_mode = #tpu.pipeline_mode<synchronous>, transform_indices = @transform_1, window_bounds = array<i64: 168, 36>}, {transform_indices = @transform_2, window_bounds = array<i64: 512, 36>}]} {
    %c0 = arith.constant 0 : index
    %c0_0 = arith.constant 0 : index
    %0 = vector.load %arg1[%c0, %c0_0] : memref<512x72xf32, #tpu.memory_space<vmem>>, vector<512x72xf32>
    %c0_1 = arith.constant 0 : index
    %c0_2 = arith.constant 0 : index
    %1 = vector.load %arg2[%c0_1, %c0_2] : memref<168x36xf32, #tpu.memory_space<vmem>>, vector<72x24xf32>
    %c136 = arith.constant 136 : index
    %c0_3 = arith.constant 0 : index
    %2 = vector.load %arg2[%c136, %c0_3] : memref<168x36xf32, #tpu.memory_space<vmem>>, vector<1x24xf32>
    %cst = arith.constant dense<0.000000e+00> : vector<512x24xf32>
    %3 = tpu.matmul %0, %1, %cst {dimension_numbers = #tpu.dot_dimension_numbers<[1], [0], [0], [1], [0, 0, 1, 1], [], []>} : vector<512x72xf32>, vector<72x24xf32>, vector<512x24xf32> -> vector<512x24xf32>
    %4 = vector.broadcast %2 : vector<1x24xf32> to vector<512x24xf32>
    %5 = arith.addf %3, %4 : vector<512x24xf32>
    %cst_4 = arith.constant 0.000000e+00 : f32
    %6 = vector.broadcast %cst_4 : f32 to vector<512x24xf32>
    %7 = arith.maximumf %5, %6 : vector<512x24xf32>
    %c72 = arith.constant 72 : index
    %c0_5 = arith.constant 0 : index
    %8 = vector.load %arg2[%c72, %c0_5] : memref<168x36xf32, #tpu.memory_space<vmem>>, vector<24x16xf32>
    %c144 = arith.constant 144 : index
    %c0_6 = arith.constant 0 : index
    %9 = vector.load %arg2[%c144, %c0_6] : memref<168x36xf32, #tpu.memory_space<vmem>>, vector<1x16xf32>
    %cst_7 = arith.constant dense<0.000000e+00> : vector<512x16xf32>
    %10 = tpu.matmul %7, %8, %cst_7 {dimension_numbers = #tpu.dot_dimension_numbers<[1], [0], [0], [1], [0, 0, 1, 1], [], []>} : vector<512x24xf32>, vector<24x16xf32>, vector<512x16xf32> -> vector<512x16xf32>
    %11 = vector.broadcast %9 : vector<1x16xf32> to vector<512x16xf32>
    %12 = arith.addf %10, %11 : vector<512x16xf32>
    %cst_8 = arith.constant 0.000000e+00 : f32
    %13 = vector.broadcast %cst_8 : f32 to vector<512x16xf32>
    %14 = arith.maximumf %12, %13 : vector<512x16xf32>
    %c96 = arith.constant 96 : index
    %c0_9 = arith.constant 0 : index
    %15 = vector.load %arg2[%c96, %c0_9] : memref<168x36xf32, #tpu.memory_space<vmem>>, vector<16x24xf32>
    %c152 = arith.constant 152 : index
    %c0_10 = arith.constant 0 : index
    %16 = vector.load %arg2[%c152, %c0_10] : memref<168x36xf32, #tpu.memory_space<vmem>>, vector<1x24xf32>
    %cst_11 = arith.constant dense<0.000000e+00> : vector<512x24xf32>
    %17 = tpu.matmul %14, %15, %cst_11 {dimension_numbers = #tpu.dot_dimension_numbers<[1], [0], [0], [1], [0, 0, 1, 1], [], []>} : vector<512x16xf32>, vector<16x24xf32>, vector<512x24xf32> -> vector<512x24xf32>
    %18 = vector.broadcast %16 : vector<1x24xf32> to vector<512x24xf32>
    %19 = arith.addf %17, %18 : vector<512x24xf32>
    %cst_12 = arith.constant 0.000000e+00 : f32
    %20 = vector.broadcast %cst_12 : f32 to vector<512x24xf32>
    %21 = arith.maximumf %19, %20 : vector<512x24xf32>
    %c112 = arith.constant 112 : index
    %c0_13 = arith.constant 0 : index
    %22 = vector.load %arg2[%c112, %c0_13] : memref<168x36xf32, #tpu.memory_space<vmem>>, vector<24x36xf32>
    %c160 = arith.constant 160 : index
    %c0_14 = arith.constant 0 : index
    %23 = vector.load %arg2[%c160, %c0_14] : memref<168x36xf32, #tpu.memory_space<vmem>>, vector<1x36xf32>
    %cst_15 = arith.constant dense<0.000000e+00> : vector<512x36xf32>
    %24 = tpu.matmul %21, %22, %cst_15 {dimension_numbers = #tpu.dot_dimension_numbers<[1], [0], [0], [1], [0, 0, 1, 1], [], []>} : vector<512x24xf32>, vector<24x36xf32>, vector<512x36xf32> -> vector<512x36xf32>
    %25 = vector.broadcast %23 : vector<1x36xf32> to vector<512x36xf32>
    %26 = arith.addf %24, %25 : vector<512x36xf32>
    %cst_16 = arith.constant 0.000000e+00 : f32
    %27 = vector.broadcast %cst_16 : f32 to vector<512x36xf32>
    %28 = arith.maximumf %26, %27 : vector<512x36xf32>
    %c0_17 = arith.constant 0 : index
    %c0_18 = arith.constant 0 : index
    %29 = vector.load %arg3[%c0_17, %c0_18] : memref<512x36xf32, #tpu.memory_space<vmem>>, vector<512x36xf32>
    tpu.vector_store %arg3[%c0_17, %c0_18], %28 {strides = array<i32>} : memref<512x36xf32, #tpu.memory_space<vmem>>, vector<512x36xf32>,
    return
  }
  func.func @transform_0(%arg0: i32) -> (i32, i32) {
    %c0_i32 = arith.constant 0 : i32
    %c0_i32_0 = arith.constant 0 : i32
    return %arg0, %c0_i32 : i32, i32
  }
  func.func @transform_1(%arg0: i32) -> (i32, i32) {
    %c0_i32 = arith.constant 0 : i32
    %c0_i32_0 = arith.constant 0 : i32
    %c0_i32_1 = arith.constant 0 : i32
    return %c0_i32, %c0_i32_0 : i32, i32
  }
  func.func @transform_2(%arg0: i32) -> (i32, i32) {
    %c0_i32 = arith.constant 0 : i32
    %c0_i32_0 = arith.constant 0 : i32
    return %arg0, %c0_i32 : i32, i32
  }
}

</mosaic_0001>

<llo_original>
// kernel: dnn_forward.1
$region0: #{dnn_forward.1}
  #allocation0 [shape = 'u32[]', space=smem, size = 0x4, offset = 0x4, fixed_abs, tag = 'smem constant byte address 0x4 - core index']
  #allocation1 [shape = 'u32[144,128]{1,0:T(1,128)}', space=vmem, size = 0x12000, scoped, tag = 'internal scratch']
  %s0 = inlined_call_operand.vmem [shape: f32[1024,72], index: 0, kind: input, shape index: {}]
  %s1 = inlined_call_operand.vmem [shape: f32[168,36], index: 1, kind: input, shape index: {}]
  %s2 = inlined_call_operand.vmem [shape: f32[1024,36], index: 2, kind: output, shape index: {}]
  %s3 = sld [smem:[#allocation0]]
  $region41: #{dnn_forward.1} parent=0
    _
  %s5 = ssub.s32 1, %s3
  %s6 = scalar_select 0, %s5, %s3
  loop: start=0, step=1, limit=4
  $region2: #{dnn_forward.1} parent=0 // loop_pre_header
    _
  $region3: #{dnn_forward.1} parent=0 // loop_header
    %s8 = sphi 0, %s12
    %p9 = scmp.ge.s32.totalorder %s8, 4
    %s18 = sphi 0, %s20
    %s21 = sphi 0, %s18
    %s22 = sphi 0, %s21
    %s38 = sphi 0, %s22
    %s42 = sphi 0, %s42
    %s44 = sphi 0, %s42
    %s45 = sphi 0, %s44
    %s59 = sphi 0, %s45
    %s65 = sphi 0, %s67
    %s68 = sphi 0, %s65
    %s69 = sphi 0, %s68
    %s85 = sphi 0, %s69
  $region4: #{dnn_forward.1} parent=0 // loop_header_branch
    %11 = sbr.rel (%p9) target = $region8
  $region5: #{dnn_forward.1} parent=0 // loop_body
    %s13 = ssub.s32 %s8, 1
    %s14 = ssub.s32 %s8, 2
    %s15 = sadd.s32 %s8, 1
    %s16 = ssub.s32 %s8, %s15
    %p17 = scmp.eq.s32.totalorder %s16, 0
    %s19 = sadd.s32 %s18, 1
    %s20 = scalar_select %p17, %s18, %s19
    %p23 = pneg %p17
    %p24 = scmp.eq.s32.totalorder %s8, 1
    %p25 = por %p23, %p24
    %p26 = scmp.ne.s32.totalorder %s18, %s21
    %p27 = scmp.eq.s32.totalorder %s8, 0
    %p28 = por %p26, %p27
    %p29 = scmp.ne.s32.totalorder %s18, %s21
    %p30 = scmp.eq.s32.totalorder %s13, 1
    %p31 = por %p29, %p30
    %p32 = scmp.ne.s32.totalorder %s21, %s22
    %p33 = scmp.eq.s32.totalorder %s13, 0
    %p34 = por %p32, %p33
    %p35 = scmp.ne.s32.totalorder %s21, %s22
    %p36 = scmp.eq.s32.totalorder %s14, 1
    %p37 = por %p35, %p36
    %p39 = scmp.ne.s32.totalorder %s22, %s38
    %p40 = scmp.eq.s32.totalorder %s14, 0
    %p41 = por %p39, %p40
    %s43 = sadd.s32 %s42, 1
    %p46 = scmp.eq.s32.totalorder %s8, 1
    %p47 = scmp.ne.s32.totalorder %s42, %s44
    %p48 = scmp.eq.s32.totalorder %s8, 0
    %p49 = por %p47, %p48
    %p50 = scmp.ne.s32.totalorder %s42, %s44
    %p51 = scmp.eq.s32.totalorder %s13, 1
    %p52 = por %p50, %p51
    %p53 = scmp.ne.s32.totalorder %s44, %s45
    %p54 = scmp.eq.s32.totalorder %s13, 0
    %p55 = por %p53, %p54
    %p56 = scmp.ne.s32.totalorder %s44, %s45
    %p57 = scmp.eq.s32.totalorder %s14, 1
    %p58 = por %p56, %p57
    %p60 = scmp.ne.s32.totalorder %s45, %s59
    %p61 = scmp.eq.s32.totalorder %s14, 0
    %p62 = por %p60, %p61
    %s63 = ssub.s32 %s8, %s15
    %p64 = scmp.eq.s32.totalorder %s63, 0
    %s66 = sadd.s32 %s65, 1
    %s67 = scalar_select %p64, %s65, %s66
    %p70 = pneg %p64
    %p71 = scmp.eq.s32.totalorder %s8, 1
    %p72 = por %p70, %p71
    %p73 = scmp.ne.s32.totalorder %s65, %s68
    %p74 = scmp.eq.s32.totalorder %s8, 0
    %p75 = por %p73, %p74
    %p76 = scmp.ne.s32.totalorder %s65, %s68
    %p77 = scmp.eq.s32.totalorder %s13, 1
    %p78 = por %p76, %p77
    %p79 = scmp.ne.s32.totalorder %s68, %s69
    %p80 = scmp.eq.s32.totalorder %s13, 0
    %p81 = por %p79, %p80
    %p82 = scmp.ne.s32.totalorder %s68, %s69
    %p83 = scmp.eq.s32.totalorder %s14, 1
    %p84 = por %p82, %p83
    %p86 = scmp.ne.s32.totalorder %s69, %s85
    %p87 = scmp.eq.s32.totalorder %s14, 0
    %p88 = por %p86, %p87
    %p89 = scmp.le.s32.totalorder 1, %s8
    %p90 = scmp.lt.s32.totalorder %s8, 3
    %p91 = pnand %p89, %p90
    %p92 = pneg %p91
    // Predicated region
    $region9: #{dnn_forward.1} parent=5 // pred_check
      _
    $region10: #{dnn_forward.1} parent=5 // pred_check_branch
      %94 = sbr.rel (%p91) target = $region12
    $region11: #{dnn_forward.1} parent=5 // pred_region
      %s95 = ssub.s32 %s8, 1
      // Predicated region
      $region13: #{dnn_forward.1} parent=11 // pred_check
        %p96 = pneg %p55
      $region14: #{dnn_forward.1} parent=11 // pred_check_branch
        %98 = sbr.rel (%p96) target = $region16
      $region15: #{dnn_forward.1} parent=11 // pred_region
        _
      $region16: #{dnn_forward.1} parent=11 // pred_fallthru
        _
    $region12: #{dnn_forward.1} parent=5 // pred_fallthru
      _
    %p99 = scmp.lt.s32.totalorder %s8, 2
    // Predicated region
    $region17: #{dnn_forward.1} parent=5 // pred_check
      %p100 = pneg %p99
    $region18: #{dnn_forward.1} parent=5 // pred_check_branch
      %102 = sbr.rel (%p100) target = $region20
    $region19: #{dnn_forward.1} parent=5 // pred_region
      // Predicated region
      $region21: #{dnn_forward.1} parent=19 // pred_check
        %p103 = pneg %p28
      $region22: #{dnn_forward.1} parent=19 // pred_check_branch
        %105 = sbr.rel (%p103) target = $region24
      $region23: #{dnn_forward.1} parent=19 // pred_region
        %s106 = smul.u32 64, %s8
        %p107 = scmp.lt.s32.totalorder %s106, 127
        %s108 = scalar_select %p107, %s106, 127
        %s109 = smul.addr %s108, 8
        %s110 = scalar_lea.vmem %s0, %s109
        %s111 = smul.u32 64, %s8
      $region24: #{dnn_forward.1} parent=19 // pred_fallthru
        _
    $region20: #{dnn_forward.1} parent=5 // pred_fallthru
      _
    %p112 = scmp.le.s32.totalorder 1, %s8
    %p113 = scmp.lt.s32.totalorder %s8, 3
    %p114 = pnand %p112, %p113
    %p115 = pneg %p114
    // Predicated region
    $region25: #{dnn_forward.1} parent=5 // pred_check
      _
    $region26: #{dnn_forward.1} parent=5 // pred_check_branch
      %117 = sbr.rel (%p114) target = $region28
    $region27: #{dnn_forward.1} parent=5 // pred_region
      %s118 = ssub.s32 %s8, 1
      %s119 = smul.u32 64, %s13
      %p120 = scmp.lt.s32.totalorder %s119, 127
      %s121 = scalar_select %p120, %s119, 127
      %s122 = smul.addr %s121, 8
      %s123 = scalar_lea.vmem %s0, %s122
      %p124 = pneg %p34
      %p125 = pneg %p31
      %p126 = pneg %p55
      %p127 = pneg %p52
      %p128 = pneg %p81
      %p129 = pneg %p78
      %s130 = smul.u32 64, %s13
      %p131 = scmp.lt.s32.totalorder %s130, 127
      %s132 = scalar_select %p131, %s130, 127
      %s133 = smul.addr %s132, 8
      %s134 = scalar_lea.vmem %s2, %s133
      %s135 = smul.u32 64, %s13
      %p136 = scmp.lt.s32.totalorder %s135, 127
      %s137 = scalar_select %p136, %s135, 127
      %s138 = smul.addr %s137, 8
      %s139 = scalar_lea.vmem %s0, %s138
      %s140 = smul.u32 64, %s13
      %s141 = smul.u32 64, %s13
      %p142 = scmp.lt.s32.totalorder %s141, 127
      %s143 = scalar_select %p142, %s141, 127
      %s144 = smul.addr %s143, 8
      %s145 = scalar_lea.vmem %s2, %s144
      %s146 = smul.u32 64, %s13
      %v147 = vld [vmem:[%s139] sm:$0xff]
      %v148 = vld [vmem:[%s139 + $0x8] sm:$0xff]
      %v149 = vld [vmem:[%s139 + $0x10] sm:$0xff]
      %v150 = vld [vmem:[%s139 + $0x18] sm:$0xff]
      %v151 = vld [vmem:[%s139 + $0x20] sm:$0xff]
      %v152 = vld [vmem:[%s139 + $0x28] sm:$0xff]
      %v153 = vld [vmem:[%s139 + $0x30] sm:$0xff]
      %v154 = vld [vmem:[%s139 + $0x38] sm:$0xff]
      %v155 = vld [vmem:[%s139 + $0x40] sm:$0xff]
      %v156 = vld [vmem:[%s139 + $0x48] sm:$0xff]
      %v157 = vld [vmem:[%s139 + $0x50] sm:$0xff]
      %v158 = vld [vmem:[%s139 + $0x58] sm:$0xff]
      %v159 = vld [vmem:[%s139 + $0x60] sm:$0xff]
      %v160 = vld [vmem:[%s139 + $0x68] sm:$0xff]
      %v161 = vld [vmem:[%s139 + $0x70] sm:$0xff]
      %v162 = vld [vmem:[%s139 + $0x78] sm:$0xff]
      %v163 = vld [vmem:[%s139 + $0x80] sm:$0xff]
      %v164 = vld [vmem:[%s139 + $0x88] sm:$0xff]
      %v165 = vld [vmem:[%s139 + $0x90] sm:$0xff]
      %v166 = vld [vmem:[%s139 + $0x98] sm:$0xff]
      %v167 = vld [vmem:[%s139 + $0xa0] sm:$0xff]
      %v168 = vld [vmem:[%s139 + $0xa8] sm:$0xff]
      %v169 = vld [vmem:[%s139 + $0xb0] sm:$0xff]
      %v170 = vld [vmem:[%s139 + $0xb8] sm:$0xff]
      %v171 = vld [vmem:[%s139 + $0xc0] sm:$0xff]
      %v172 = vld [vmem:[%s139 + $0xc8] sm:$0xff]
      %v173 = vld [vmem:[%s139 + $0xd0] sm:$0xff]
      %v174 = vld [vmem:[%s139 + $0xd8] sm:$0xff]
      %v175 = vld [vmem:[%s139 + $0xe0] sm:$0xff]
      %v176 = vld [vmem:[%s139 + $0xe8] sm:$0xff]
      %v177 = vld [vmem:[%s139 + $0xf0] sm:$0xff]
      %v178 = vld [vmem:[%s139 + $0xf8] sm:$0xff]
      %v179 = vld [vmem:[%s139 + $0x100] sm:$0xff]
      %v180 = vld [vmem:[%s139 + $0x108] sm:$0xff]
      %v181 = vld [vmem:[%s139 + $0x110] sm:$0xff]
      %v182 = vld [vmem:[%s139 + $0x118] sm:$0xff]
      %v183 = vld [vmem:[%s139 + $0x120] sm:$0xff]
      %v184 = vld [vmem:[%s139 + $0x128] sm:$0xff]
      %v185 = vld [vmem:[%s139 + $0x130] sm:$0xff]
      %v186 = vld [vmem:[%s139 + $0x138] sm:$0xff]
      %v187 = vld [vmem:[%s139 + $0x140] sm:$0xff]
      %v188 = vld [vmem:[%s139 + $0x148] sm:$0xff]
      %v189 = vld [vmem:[%s139 + $0x150] sm:$0xff]
      %v190 = vld [vmem:[%s139 + $0x158] sm:$0xff]
      %v191 = vld [vmem:[%s139 + $0x160] sm:$0xff]
      %v192 = vld [vmem:[%s139 + $0x168] sm:$0xff]
      %v193 = vld [vmem:[%s139 + $0x170] sm:$0xff]
      %v194 = vld [vmem:[%s139 + $0x178] sm:$0xff]
      %v195 = vld [vmem:[%s139 + $0x180] sm:$0xff]
      %v196 = vld [vmem:[%s139 + $0x188] sm:$0xff]
      %v197 = vld [vmem:[%s139 + $0x190] sm:$0xff]
      %v198 = vld [vmem:[%s139 + $0x198] sm:$0xff]
      %v199 = vld [vmem:[%s139 + $0x1a0] sm:$0xff]
      %v200 = vld [vmem:[%s139 + $0x1a8] sm:$0xff]
      %v201 = vld [vmem:[%s139 + $0x1b0] sm:$0xff]
      %v202 = vld [vmem:[%s139 + $0x1b8] sm:$0xff]
      %v203 = vld [vmem:[%s139 + $0x1c0] sm:$0xff]
      %v204 = vld [vmem:[%s139 + $0x1c8] sm:$0xff]
      %v205 = vld [vmem:[%s139 + $0x1d0] sm:$0xff]
      %v206 = vld [vmem:[%s139 + $0x1d8] sm:$0xff]
      %v207 = vld [vmem:[%s139 + $0x1e0] sm:$0xff]
      %v208 = vld [vmem:[%s139 + $0x1e8] sm:$0xff]
      %v209 = vld [vmem:[%s139 + $0x1f0] sm:$0xff]
      %v210 = vld [vmem:[%s139 + $0x1f8] sm:$0xff]
      %v211 = vld [vmem:[%s1] sm:$0xff]
      %v212 = vld [vmem:[%s1 + $0x8] sm:$0xff]
      %v213 = vld [vmem:[%s1 + $0x10] sm:$0xff]
      %v214 = vld [vmem:[%s1 + $0x18] sm:$0xff]
      %v215 = vld [vmem:[%s1 + $0x20] sm:$0xff]
      %v216 = vld [vmem:[%s1 + $0x28] sm:$0xff]
      %v217 = vld [vmem:[%s1 + $0x30] sm:$0xff]
      %v218 = vld [vmem:[%s1 + $0x38] sm:$0xff]
      %v219 = vld [vmem:[%s1 + $0x40] sm:$0xff]
      %v220 = vld [vmem:[%s1 + $0x88] sm:$0x1]
      %v221 = vlaneseq
      %v222 = vshrl.u32 %v221, 7
      %v223 = vsub.s32 0, %v222
      %v224 = vrot.slane %v220, %v223
      %vm225 = vcmask 588800
      %v227 = vsel %vm225, %v147, 0
      %v230 = vsel %vm225, %v148, 0
      %v233 = vsel %vm225, %v149, 0
      %v236 = vsel %vm225, %v150, 0
      %v239 = vsel %vm225, %v151, 0
      %v242 = vsel %vm225, %v152, 0
      %v245 = vsel %vm225, %v153, 0
      %v248 = vsel %vm225, %v154, 0
      %v251 = vsel %vm225, %v155, 0
      %v254 = vsel %vm225, %v156, 0
      %v257 = vsel %vm225, %v157, 0
      %v260 = vsel %vm225, %v158, 0
      %v263 = vsel %vm225, %v159, 0
      %v266 = vsel %vm225, %v160, 0
      %v269 = vsel %vm225, %v161, 0
      %v272 = vsel %vm225, %v162, 0
      %v275 = vsel %vm225, %v163, 0
      %v278 = vsel %vm225, %v164, 0
      %v281 = vsel %vm225, %v165, 0
      %v284 = vsel %vm225, %v166, 0
      %v287 = vsel %vm225, %v167, 0
      %v290 = vsel %vm225, %v168, 0
      %v293 = vsel %vm225, %v169, 0
      %v296 = vsel %vm225, %v170, 0
      %v299 = vsel %vm225, %v171, 0
      %v302 = vsel %vm225, %v172, 0
      %v305 = vsel %vm225, %v173, 0
      %v308 = vsel %vm225, %v174, 0
      %v311 = vsel %vm225, %v175, 0
      %v314 = vsel %vm225, %v176, 0
      %v317 = vsel %vm225, %v177, 0
      %v320 = vsel %vm225, %v178, 0
      %v323 = vsel %vm225, %v179, 0
      %v326 = vsel %vm225, %v180, 0
      %v329 = vsel %vm225, %v181, 0
      %v332 = vsel %vm225, %v182, 0
      %v335 = vsel %vm225, %v183, 0
      %v338 = vsel %vm225, %v184, 0
      %v341 = vsel %vm225, %v185, 0
      %v344 = vsel %vm225, %v186, 0
      %v347 = vsel %vm225, %v187, 0
      %v350 = vsel %vm225, %v188, 0
      %v353 = vsel %vm225, %v189, 0
      %v356 = vsel %vm225, %v190, 0
      %v359 = vsel %vm225, %v191, 0
      %v362 = vsel %vm225, %v192, 0
      %v365 = vsel %vm225, %v193, 0
      %v368 = vsel %vm225, %v194, 0
      %v371 = vsel %vm225, %v195, 0
      %v374 = vsel %vm225, %v196, 0
      %v377 = vsel %vm225, %v197, 0
      %v380 = vsel %vm225, %v198, 0
      %v383 = vsel %vm225, %v199, 0
      %v386 = vsel %vm225, %v200, 0
      %v389 = vsel %vm225, %v201, 0
      %v392 = vsel %vm225, %v202, 0
      %v395 = vsel %vm225, %v203, 0
      %v398 = vsel %vm225, %v204, 0
      %v401 = vsel %vm225, %v205, 0
      %v404 = vsel %vm225, %v206, 0
      %v407 = vsel %vm225, %v207, 0
      %v410 = vsel %vm225, %v208, 0
      %v413 = vsel %vm225, %v209, 0
      %v416 = vsel %vm225, %v210, 0
      %418 = vmatprep.subr.mxu0 0.0
      %419 = vmatpush1.msra.mxu0 %v211
      %420 = vmatprep.subr.mxu0 0.0
      %421 = vmatpush1.msra.mxu0 %v212
      %422 = vmatprep.subr.mxu0 0.0
      %423 = vmatpush1.msra.mxu0 %v213
      %424 = vmatprep.subr.mxu0 0.0
      %425 = vmatpush1.msra.mxu0 %v214
      %426 = vmatprep.subr.mxu0 0.0
      %427 = vmatpush1.msra.mxu0 %v215
      %428 = vmatprep.subr.mxu0 0.0
      %429 = vmatpush1.msra.mxu0 %v216
      %430 = vmatprep.subr.mxu0 0.0
      %431 = vmatpush1.msra.mxu0 %v217
      %432 = vmatprep.subr.mxu0 0.0
      %433 = vmatpush1.msra.mxu0 %v218
      %434 = vmatprep.subr.mxu0 0.0
      %435 = vmatpush1.msra.mxu0 %v219
      %436 = vmatprep.subr.mxu0 0.0
      %437 = vmatpush1.msra.mxu0 0.0
      %438 = vmatprep.subr.mxu0 0.0
      %439 = vmatpush1.msra.mxu0 0.0
      %440 = vmatprep.subr.mxu0 0.0
      %441 = vmatpush1.msra.mxu0 0.0
      %442 = vmatprep.subr.mxu0 0.0
      %443 = vmatpush1.msra.mxu0 0.0
      %444 = vmatprep.subr.mxu0 0.0
      %445 = vmatpush1.msra.mxu0 0.0
      %446 = vmatprep.subr.mxu0 0.0
      %447 = vmatpush1.msra.mxu0 0.0
      %448 = vmatprep.subr.mxu0 0.0
      %449 = vmatpush1.msra.mxu0 0.0
      %450 = vmatprep.subr.mxu0 0.0
      %451 = vmatpush1.msra.mxu0 0.0
      %452 = vmatprep.subr.mxu0 0.0
      %453 = vmatpush1.msra.mxu0 0.0
      %454 = vmatprep.subr.mxu0 0.0
      %455 = vmatpush1.msra.mxu0 0.0
      %456 = vmatprep.subr.mxu0 0.0
      %457 = vmatpush1.msra.mxu0 0.0
      %458 = vmatprep.subr.mxu0 0.0
      %459 = vmatpush1.msra.mxu0 0.0
      %460 = vmatprep.subr.mxu0 0.0
      %461 = vmatpush1.msra.mxu0 0.0
      %462 = vmatprep.subr.mxu0 0.0
      %463 = vmatpush1.msra.mxu0 0.0
      %464 = vmatprep.subr.mxu0 0.0
      %465 = vmatpush1.msra.mxu0 0.0
      %466 = vmatprep.subr.mxu0 0.0
      %467 = vmatpush1.msra.mxu0 0.0
      %468 = vmatprep.subr.mxu0 0.0
      %469 = vmatpush1.msra.mxu0 0.0
      %470 = vmatprep.subr.mxu0 0.0
      %471 = vmatpush1.msra.mxu0 0.0
      %472 = vmatprep.subr.mxu0 0.0
      %473 = vmatpush1.msra.mxu0 0.0
      %474 = vmatprep.subr.mxu0 0.0
      %475 = vmatpush1.msra.mxu0 0.0
      %476 = vmatprep.subr.mxu0 0.0
      %477 = vmatpush1.msra.mxu0 0.0
      %478 = vmatprep.subr.mxu0 0.0
      %479 = vmatpush1.msra.mxu0 0.0
      %480 = vmatprep.subr.mxu0 0.0
      %481 = vmatpush1.msra.mxu0 0.0
      %482 = vmatprep.mubr.f32.mxu0 0.0
      %483 = vmatmul.mubr.f32.gmra.mrb[0].mxu0 %v227
      %v484 = vpop.f32.mrb[0].mxu0
      %v485 = vadd.f32 %v224, %v484
      %v486 = vpop.f32.mrb[0].mxu0
      %487 = vmatprep.mubr.f32.mxu0 0.0
      %488 = vmatmul.mubr.f32.gmra.mrb[0].mxu0 %v230
      %v489 = vpop.f32.mrb[0].mxu0
      %v490 = vadd.f32 %v224, %v489
      %v491 = vpop.f32.mrb[0].mxu0
      %492 = vmatprep.mubr.f32.mxu0 0.0
      %493 = vmatmul.mubr.f32.gmra.mrb[0].mxu0 %v233
      %v494 = vpop.f32.mrb[0].mxu0
      %v495 = vadd.f32 %v224, %v494
      %v496 = vpop.f32.mrb[0].mxu0
      %497 = vmatprep.mubr.f32.mxu0 0.0
      %498 = vmatmul.mubr.f32.gmra.mrb[0].mxu0 %v236
      %v499 = vpop.f32.mrb[0].mxu0
      %v500 = vadd.f32 %v224, %v499
      %v501 = vpop.f32.mrb[0].mxu0
      %502 = vmatprep.mubr.f32.mxu0 0.0
      %503 = vmatmul.mubr.f32.gmra.mrb[0].mxu0 %v239
      %v504 = vpop.f32.mrb[0].mxu0
      %v505 = vadd.f32 %v224, %v504
      %v506 = vpop.f32.mrb[0].mxu0
      %507 = vmatprep.mubr.f32.mxu0 0.0
      %508 = vmatmul.mubr.f32.gmra.mrb[0].mxu0 %v242
      %v509 = vpop.f32.mrb[0].mxu0
      %v510 = vadd.f32 %v224, %v509
      %v511 = vpop.f32.mrb[0].mxu0
      %512 = vmatprep.mubr.f32.mxu0 0.0
      %513 = vmatmul.mubr.f32.gmra.mrb[0].mxu0 %v245
      %v514 = vpop.f32.mrb[0].mxu0
      %v515 = vadd.f32 %v224, %v514
      %v516 = vpop.f32.mrb[0].mxu0
      %517 = vmatprep.mubr.f32.mxu0 0.0
      %518 = vmatmul.mubr.f32.gmra.mrb[0].mxu0 %v248
      %v519 = vpop.f32.mrb[0].mxu0
      %v520 = vadd.f32 %v224, %v519
      %v521 = vpop.f32.mrb[0].mxu0
      %522 = vmatprep.mubr.f32.mxu0 0.0
      %523 = vmatmul.mubr.f32.gmra.mrb[0].mxu0 %v251
      %v524 = vpop.f32.mrb[0].mxu0
      %v525 = vadd.f32 %v224, %v524
      %v526 = vpop.f32.mrb[0].mxu0
      %527 = vmatprep.mubr.f32.mxu0 0.0
      %528 = vmatmul.mubr.f32.gmra.mrb[0].mxu0 %v254
      %v529 = vpop.f32.mrb[0].mxu0
      %v530 = vadd.f32 %v224, %v529
      %v531 = vpop.f32.mrb[0].mxu0
      %532 = vmatprep.mubr.f32.mxu0 0.0
      %533 = vmatmul.mubr.f32.gmra.mrb[0].mxu0 %v257
      %v534 = vpop.f32.mrb[0].mxu0
      %v535 = vadd.f32 %v224, %v534
      %v536 = vpop.f32.mrb[0].mxu0
      %537 = vmatprep.mubr.f32.mxu0 0.0
      %538 = vmatmul.mubr.f32.gmra.mrb[0].mxu0 %v260
      %v539 = vpop.f32.mrb[0].mxu0
      %v540 = vadd.f32 %v224, %v539
      %v541 = vpop.f32.mrb[0].mxu0
      %542 = vmatprep.mubr.f32.mxu0 0.0
      %543 = vmatmul.mubr.f32.gmra.mrb[0].mxu0 %v263
      %v544 = vpop.f32.mrb[0].mxu0
      %v545 = vadd.f32 %v224, %v544
      %v546 = vpop.f32.mrb[0].mxu0
      %547 = vmatprep.mubr.f32.mxu0 0.0
      %548 = vmatmul.mubr.f32.gmra.mrb[0].mxu0 %v266
      %v549 = vpop.f32.mrb[0].mxu0
      %v550 = vadd.f32 %v224, %v549
      %v551 = vpop.f32.mrb[0].mxu0
      %552 = vmatprep.mubr.f32.mxu0 0.0
      %553 = vmatmul.mubr.f32.gmra.mrb[0].mxu0 %v269
      %v554 = vpop.f32.mrb[0].mxu0
      %v555 = vadd.f32 %v224, %v554
      %v556 = vpop.f32.mrb[0].mxu0
      %557 = vmatprep.mubr.f32.mxu0 0.0
      %558 = vmatmul.mubr.f32.gmra.mrb[0].mxu0 %v272
      %v559 = vpop.f32.mrb[0].mxu0
      %v560 = vadd.f32 %v224, %v559
      %v561 = vpop.f32.mrb[0].mxu0
      %562 = vmatprep.mubr.f32.mxu0 0.0
      %563 = vmatmul.mubr.f32.gmra.mrb[0].mxu0 %v275
      %v564 = vpop.f32.mrb[0].mxu0
      %v565 = vadd.f32 %v224, %v564
      %v566 = vpop.f32.mrb[0].mxu0
      %567 = vmatprep.mubr.f32.mxu0 0.0
      %568 = vmatmul.mubr.f32.gmra.mrb[0].mxu0 %v278
      %v569 = vpop.f32.mrb[0].mxu0
      %v570 = vadd.f32 %v224, %v569
      %v571 = vpop.f32.mrb[0].mxu0
      %572 = vmatprep.mubr.f32.mxu0 0.0
      %573 = vmatmul.mubr.f32.gmra.mrb[0].mxu0 %v281
      %v574 = vpop.f32.mrb[0].mxu0
      %v575 = vadd.f32 %v224, %v574
      %v576 = vpop.f32.mrb[0].mxu0
      %577 = vmatprep.mubr.f32.mxu0 0.0
      %578 = vmatmul.mubr.f32.gmra.mrb[0].mxu0 %v284
      %v579 = vpop.f32.mrb[0].mxu0
      %v580 = vadd.f32 %v224, %v579
      %v581 = vpop.f32.mrb[0].mxu0
      %582 = vmatprep.mubr.f32.mxu0 0.0
      %583 = vmatmul.mubr.f32.gmra.mrb[0].mxu0 %v287
      %v584 = vpop.f32.mrb[0].mxu0
      %v585 = vadd.f32 %v224, %v584
      %v586 = vpop.f32.mrb[0].mxu0
      %587 = vmatprep.mubr.f32.mxu0 0.0
      %588 = vmatmul.mubr.f32.gmra.mrb[0].mxu0 %v290
      %v589 = vpop.f32.mrb[0].mxu0
      %v590 = vadd.f32 %v224, %v589
      %v591 = vpop.f32.mrb[0].mxu0
      %592 = vmatprep.mubr.f32.mxu0 0.0
      %593 = vmatmul.mubr.f32.gmra.mrb[0].mxu0 %v293
      %v594 = vpop.f32.mrb[0].mxu0
      %v595 = vadd.f32 %v224, %v594
      %v596 = vpop.f32.mrb[0].mxu0
      %597 = vmatprep.mubr.f32.mxu0 0.0
      %598 = vmatmul.mubr.f32.gmra.mrb[0].mxu0 %v296
      %v599 = vpop.f32.mrb[0].mxu0
      %v600 = vadd.f32 %v224, %v599
      %v601 = vpop.f32.mrb[0].mxu0
      %602 = vmatprep.mubr.f32.mxu0 0.0
      %603 = vmatmul.mubr.f32.gmra.mrb[0].mxu0 %v299
      %v604 = vpop.f32.mrb[0].mxu0
      %v605 = vadd.f32 %v224, %v604
      %v606 = vpop.f32.mrb[0].mxu0
      %607 = vmatprep.mubr.f32.mxu0 0.0
      %608 = vmatmul.mubr.f32.gmra.mrb[0].mxu0 %v302
      %v609 = vpop.f32.mrb[0].mxu0
      %v610 = vadd.f32 %v224, %v609
      %v611 = vpop.f32.mrb[0].mxu0
      %612 = vmatprep.mubr.f32.mxu0 0.0
      %613 = vmatmul.mubr.f32.gmra.mrb[0].mxu0 %v305
      %v614 = vpop.f32.mrb[0].mxu0
      %v615 = vadd.f32 %v224, %v614
      %v616 = vpop.f32.mrb[0].mxu0
      %617 = vmatprep.mubr.f32.mxu0 0.0
      %618 = vmatmul.mubr.f32.gmra.mrb[0].mxu0 %v308
      %v619 = vpop.f32.mrb[0].mxu0
      %v620 = vadd.f32 %v224, %v619
      %v621 = vpop.f32.mrb[0].mxu0
      %622 = vmatprep.mubr.f32.mxu0 0.0
      %623 = vmatmul.mubr.f32.gmra.mrb[0].mxu0 %v311
      %v624 = vpop.f32.mrb[0].mxu0
      %v625 = vadd.f32 %v224, %v624
      %v626 = vpop.f32.mrb[0].mxu0
      %627 = vmatprep.mubr.f32.mxu0 0.0
      %628 = vmatmul.mubr.f32.gmra.mrb[0].mxu0 %v314
      %v629 = vpop.f32.mrb[0].mxu0
      %v630 = vadd.f32 %v224, %v629
      %v631 = vpop.f32.mrb[0].mxu0
      %632 = vmatprep.mubr.f32.mxu0 0.0
      %633 = vmatmul.mubr.f32.gmra.mrb[0].mxu0 %v317
      %v634 = vpop.f32.mrb[0].mxu0
      %v635 = vadd.f32 %v224, %v634
      %v636 = vpop.f32.mrb[0].mxu0
      %637 = vmatprep.mubr.f32.mxu0 0.0
      %638 = vmatmul.mubr.f32.gmra.mrb[0].mxu0 %v320
      %v639 = vpop.f32.mrb[0].mxu0
      %v640 = vadd.f32 %v224, %v639
      %v641 = vpop.f32.mrb[0].mxu0
      %642 = vmatprep.mubr.f32.mxu0 0.0
      %643 = vmatmul.mubr.f32.gmra.mrb[0].mxu0 %v323
      %v644 = vpop.f32.mrb[0].mxu0
      %v645 = vadd.f32 %v224, %v644
      %v646 = vpop.f32.mrb[0].mxu0
      %647 = vmatprep.mubr.f32.mxu0 0.0
      %648 = vmatmul.mubr.f32.gmra.mrb[0].mxu0 %v326
      %v649 = vpop.f32.mrb[0].mxu0
      %v650 = vadd.f32 %v224, %v649
      %v651 = vpop.f32.mrb[0].mxu0
      %652 = vmatprep.mubr.f32.mxu0 0.0
      %653 = vmatmul.mubr.f32.gmra.mrb[0].mxu0 %v329
      %v654 = vpop.f32.mrb[0].mxu0
      %v655 = vadd.f32 %v224, %v654
      %v656 = vpop.f32.mrb[0].mxu0
      %657 = vmatprep.mubr.f32.mxu0 0.0
      %658 = vmatmul.mubr.f32.gmra.mrb[0].mxu0 %v332
      %v659 = vpop.f32.mrb[0].mxu0
      %v660 = vadd.f32 %v224, %v659
      %v661 = vpop.f32.mrb[0].mxu0
      %662 = vmatprep.mubr.f32.mxu0 0.0
      %663 = vmatmul.mubr.f32.gmra.mrb[0].mxu0 %v335
      %v664 = vpop.f32.mrb[0].mxu0
      %v665 = vadd.f32 %v224, %v664
      %v666 = vpop.f32.mrb[0].mxu0
      %667 = vmatprep.mubr.f32.mxu0 0.0
      %668 = vmatmul.mubr.f32.gmra.mrb[0].mxu0 %v338
      %v669 = vpop.f32.mrb[0].mxu0
      %v670 = vadd.f32 %v224, %v669
      %v671 = vpop.f32.mrb[0].mxu0
      %672 = vmatprep.mubr.f32.mxu0 0.0
      %673 = vmatmul.mubr.f32.gmra.mrb[0].mxu0 %v341
      %v674 = vpop.f32.mrb[0].mxu0
      %v675 = vadd.f32 %v224, %v674
      %v676 = vpop.f32.mrb[0].mxu0
      %677 = vmatprep.mubr.f32.mxu0 0.0
      %678 = vmatmul.mubr.f32.gmra.mrb[0].mxu0 %v344
      %v679 = vpop.f32.mrb[0].mxu0
      %v680 = vadd.f32 %v224, %v679
      %v681 = vpop.f32.mrb[0].mxu0
      %682 = vmatprep.mubr.f32.mxu0 0.0
      %683 = vmatmul.mubr.f32.gmra.mrb[0].mxu0 %v347
      %v684 = vpop.f32.mrb[0].mxu0
      %v685 = vadd.f32 %v224, %v684
      %v686 = vpop.f32.mrb[0].mxu0
      %687 = vmatprep.mubr.f32.mxu0 0.0
      %688 = vmatmul.mubr.f32.gmra.mrb[0].mxu0 %v350
      %v689 = vpop.f32.mrb[0].mxu0
      %v690 = vadd.f32 %v224, %v689
      %v691 = vpop.f32.mrb[0].mxu0
      %692 = vmatprep.mubr.f32.mxu0 0.0
      %693 = vmatmul.mubr.f32.gmra.mrb[0].mxu0 %v353
      %v694 = vpop.f32.mrb[0].mxu0
      %v695 = vadd.f32 %v224, %v694
      %v696 = vpop.f32.mrb[0].mxu0
      %697 = vmatprep.mubr.f32.mxu0 0.0
      %698 = vmatmul.mubr.f32.gmra.mrb[0].mxu0 %v356
      %v699 = vpop.f32.mrb[0].mxu0
      %v700 = vadd.f32 %v224, %v699
      %v701 = vpop.f32.mrb[0].mxu0
      %702 = vmatprep.mubr.f32.mxu0 0.0
      %703 = vmatmul.mubr.f32.gmra.mrb[0].mxu0 %v359
      %v704 = vpop.f32.mrb[0].mxu0
      %v705 = vadd.f32 %v224, %v704
      %v706 = vpop.f32.mrb[0].mxu0
      %707 = vmatprep.mubr.f32.mxu0 0.0
      %708 = vmatmul.mubr.f32.gmra.mrb[0].mxu0 %v362
      %v709 = vpop.f32.mrb[0].mxu0
      %v710 = vadd.f32 %v224, %v709
      %v711 = vpop.f32.mrb[0].mxu0
      %712 = vmatprep.mubr.f32.mxu0 0.0
      %713 = vmatmul.mubr.f32.gmra.mrb[0].mxu0 %v365
      %v714 = vpop.f32.mrb[0].mxu0
      %v715 = vadd.f32 %v224, %v714
      %v716 = vpop.f32.mrb[0].mxu0
      %717 = vmatprep.mubr.f32.mxu0 0.0
      %718 = vmatmul.mubr.f32.gmra.mrb[0].mxu0 %v368
      %v719 = vpop.f32.mrb[0].mxu0
      %v720 = vadd.f32 %v224, %v719
      %v721 = vpop.f32.mrb[0].mxu0
      %722 = vmatprep.mubr.f32.mxu0 0.0
      %723 = vmatmul.mubr.f32.gmra.mrb[0].mxu0 %v371
      %v724 = vpop.f32.mrb[0].mxu0
      %v725 = vadd.f32 %v224, %v724
      %v726 = vpop.f32.mrb[0].mxu0
      %727 = vmatprep.mubr.f32.mxu0 0.0
      %728 = vmatmul.mubr.f32.gmra.mrb[0].mxu0 %v374
      %v729 = vpop.f32.mrb[0].mxu0
      %v730 = vadd.f32 %v224, %v729
      %v731 = vpop.f32.mrb[0].mxu0
      %732 = vmatprep.mubr.f32.mxu0 0.0
      %733 = vmatmul.mubr.f32.gmra.mrb[0].mxu0 %v377
      %v734 = vpop.f32.mrb[0].mxu0
      %v735 = vadd.f32 %v224, %v734
      %v736 = vpop.f32.mrb[0].mxu0
      %737 = vmatprep.mubr.f32.mxu0 0.0
      %738 = vmatmul.mubr.f32.gmra.mrb[0].mxu0 %v380
      %v739 = vpop.f32.mrb[0].mxu0
      %v740 = vadd.f32 %v224, %v739
      %v741 = vpop.f32.mrb[0].mxu0
      %742 = vmatprep.mubr.f32.mxu0 0.0
      %743 = vmatmul.mubr.f32.gmra.mrb[0].mxu0 %v383
      %v744 = vpop.f32.mrb[0].mxu0
      %v745 = vadd.f32 %v224, %v744
      %v746 = vpop.f32.mrb[0].mxu0
      %747 = vmatprep.mubr.f32.mxu0 0.0
      %748 = vmatmul.mubr.f32.gmra.mrb[0].mxu0 %v386
      %v749 = vpop.f32.mrb[0].mxu0
      %v750 = vadd.f32 %v224, %v749
      %v751 = vpop.f32.mrb[0].mxu0
      %752 = vmatprep.mubr.f32.mxu0 0.0
      %753 = vmatmul.mubr.f32.gmra.mrb[0].mxu0 %v389
      %v754 = vpop.f32.mrb[0].mxu0
      %v755 = vadd.f32 %v224, %v754
      %v756 = vpop.f32.mrb[0].mxu0
      %757 = vmatprep.mubr.f32.mxu0 0.0
      %758 = vmatmul.mubr.f32.gmra.mrb[0].mxu0 %v392
      %v759 = vpop.f32.mrb[0].mxu0
      %v760 = vadd.f32 %v224, %v759
      %v761 = vpop.f32.mrb[0].mxu0
      %762 = vmatprep.mubr.f32.mxu0 0.0
      %763 = vmatmul.mubr.f32.gmra.mrb[0].mxu0 %v395
      %v764 = vpop.f32.mrb[0].mxu0
      %v765 = vadd.f32 %v224, %v764
      %v766 = vpop.f32.mrb[0].mxu0
      %767 = vmatprep.mubr.f32.mxu0 0.0
      %768 = vmatmul.mubr.f32.gmra.mrb[0].mxu0 %v398
      %v769 = vpop.f32.mrb[0].mxu0
      %v770 = vadd.f32 %v224, %v769
      %v771 = vpop.f32.mrb[0].mxu0
      %772 = vmatprep.mubr.f32.mxu0 0.0
      %773 = vmatmul.mubr.f32.gmra.mrb[0].mxu0 %v401
      %v774 = vpop.f32.mrb[0].mxu0
      %v775 = vadd.f32 %v224, %v774
      %v776 = vpop.f32.mrb[0].mxu0
      %777 = vmatprep.mubr.f32.mxu0 0.0
      %778 = vmatmul.mubr.f32.gmra.mrb[0].mxu0 %v404
      %v779 = vpop.f32.mrb[0].mxu0
      %v780 = vadd.f32 %v224, %v779
      %v781 = vpop.f32.mrb[0].mxu0
      %782 = vmatprep.mubr.f32.mxu0 0.0
      %783 = vmatmul.mubr.f32.gmra.mrb[0].mxu0 %v407
      %v784 = vpop.f32.mrb[0].mxu0
      %v785 = vadd.f32 %v224, %v784
      %v786 = vpop.f32.mrb[0].mxu0
      %787 = vmatprep.mubr.f32.mxu0 0.0
      %788 = vmatmul.mubr.f32.gmra.mrb[0].mxu0 %v410
      %v789 = vpop.f32.mrb[0].mxu0
      %v790 = vadd.f32 %v224, %v789
      %v791 = vpop.f32.mrb[0].mxu0
      %792 = vmatprep.mubr.f32.mxu0 0.0
      %793 = vmatmul.mubr.f32.gmra.mrb[0].mxu0 %v413
      %v794 = vpop.f32.mrb[0].mxu0
      %v795 = vadd.f32 %v224, %v794
      %v796 = vpop.f32.mrb[0].mxu0
      %797 = vmatprep.mubr.f32.mxu0 0.0
      %798 = vmatmul.mubr.f32.gmra.mrb[0].mxu0 %v416
      %v799 = vpop.f32.mrb[0].mxu0
      %v800 = vadd.f32 %v224, %v799
      %v801 = vpop.f32.mrb[0].mxu0
      %802 = vdwg.mxu0
      %v803 = vmax.f32 %v485, 0.0
      %v804 = vmax.f32 %v490, 0.0
      %v805 = vmax.f32 %v495, 0.0
      %v806 = vmax.f32 %v500, 0.0
      %v807 = vmax.f32 %v505, 0.0
      %v808 = vmax.f32 %v510, 0.0
      %v809 = vmax.f32 %v515, 0.0
      %v810 = vmax.f32 %v520, 0.0
      %v811 = vmax.f32 %v525, 0.0
      %v812 = vmax.f32 %v530, 0.0
      %v813 = vmax.f32 %v535, 0.0
      %v814 = vmax.f32 %v540, 0.0
      %v815 = vmax.f32 %v545, 0.0
      %v816 = vmax.f32 %v550, 0.0
      %v817 = vmax.f32 %v555, 0.0
      %v818 = vmax.f32 %v560, 0.0
      %v819 = vmax.f32 %v565, 0.0
      %v820 = vmax.f32 %v570, 0.0
      %v821 = vmax.f32 %v575, 0.0
      %v822 = vmax.f32 %v580, 0.0
      %v823 = vmax.f32 %v585, 0.0
      %v824 = vmax.f32 %v590, 0.0
      %v825 = vmax.f32 %v595, 0.0
      %v826 = vmax.f32 %v600, 0.0
      %v827 = vmax.f32 %v605, 0.0
      %v828 = vmax.f32 %v610, 0.0
      %v829 = vmax.f32 %v615, 0.0
      %v830 = vmax.f32 %v620, 0.0
      %v831 = vmax.f32 %v625, 0.0
      %v832 = vmax.f32 %v630, 0.0
      %v833 = vmax.f32 %v635, 0.0
      %v834 = vmax.f32 %v640, 0.0
      %v835 = vmax.f32 %v645, 0.0
      %v836 = vmax.f32 %v650, 0.0
      %v837 = vmax.f32 %v655, 0.0
      %v838 = vmax.f32 %v660, 0.0
      %v839 = vmax.f32 %v665, 0.0
      %v840 = vmax.f32 %v670, 0.0
      %v841 = vmax.f32 %v675, 0.0
      %v842 = vmax.f32 %v680, 0.0
      %v843 = vmax.f32 %v685, 0.0
      %v844 = vmax.f32 %v690, 0.0
      %v845 = vmax.f32 %v695, 0.0
      %v846 = vmax.f32 %v700, 0.0
      %v847 = vmax.f32 %v705, 0.0
      %v848 = vmax.f32 %v710, 0.0
      %v849 = vmax.f32 %v715, 0.0
      %v850 = vmax.f32 %v720, 0.0
      %v851 = vmax.f32 %v725, 0.0
      %v852 = vmax.f32 %v730, 0.0
      %v853 = vmax.f32 %v735, 0.0
      %v854 = vmax.f32 %v740, 0.0
      %v855 = vmax.f32 %v745, 0.0
      %v856 = vmax.f32 %v750, 0.0
      %v857 = vmax.f32 %v755, 0.0
      %v858 = vmax.f32 %v760, 0.0
      %v859 = vmax.f32 %v765, 0.0
      %v860 = vmax.f32 %v770, 0.0
      %v861 = vmax.f32 %v775, 0.0
      %v862 = vmax.f32 %v780, 0.0
      %v863 = vmax.f32 %v785, 0.0
      %v864 = vmax.f32 %v790, 0.0
      %v865 = vmax.f32 %v795, 0.0
      %v866 = vmax.f32 %v800, 0.0
      %v867 = vld [vmem:[%s1 + $0x48] sm:$0xff]
      %v868 = vld [vmem:[%s1 + $0x50] sm:$0xff]
      %v869 = vld [vmem:[%s1 + $0x58] sm:$0xff]
      %v870 = vld [vmem:[%s1 + $0x90] sm:$0x1]
      %v871 = vlaneseq
      %v872 = vshrl.u32 %v871, 7
      %v873 = vsub.s32 0, %v872
      %v874 = vrot.slane %v870, %v873
      %vm875 = vcmask 195584
      %v877 = vsel %vm875, %v803, 0
      %v880 = vsel %vm875, %v804, 0
      %v883 = vsel %vm875, %v805, 0
      %v886 = vsel %vm875, %v806, 0
      %v889 = vsel %vm875, %v807, 0
      %v892 = vsel %vm875, %v808, 0
      %v895 = vsel %vm875, %v809, 0
      %v898 = vsel %vm875, %v810, 0
      %v901 = vsel %vm875, %v811, 0
      %v904 = vsel %vm875, %v812, 0
      %v907 = vsel %vm875, %v813, 0
      %v910 = vsel %vm875, %v814, 0
      %v913 = vsel %vm875, %v815, 0
      %v916 = vsel %vm875, %v816, 0
      %v919 = vsel %vm875, %v817, 0
      %v922 = vsel %vm875, %v818, 0
      %v925 = vsel %vm875, %v819, 0
      %v928 = vsel %vm875, %v820, 0
      %v931 = vsel %vm875, %v821, 0
      %v934 = vsel %vm875, %v822, 0
      %v937 = vsel %vm875, %v823, 0
      %v940 = vsel %vm875, %v824, 0
      %v943 = vsel %vm875, %v825, 0
      %v946 = vsel %vm875, %v826, 0
      %v949 = vsel %vm875, %v827, 0
      %v952 = vsel %vm875, %v828, 0
      %v955 = vsel %vm875, %v829, 0
      %v958 = vsel %vm875, %v830, 0
      %v961 = vsel %vm875, %v831, 0
      %v964 = vsel %vm875, %v832, 0
      %v967 = vsel %vm875, %v833, 0
      %v970 = vsel %vm875, %v834, 0
      %v973 = vsel %vm875, %v835, 0
      %v976 = vsel %vm875, %v836, 0
      %v979 = vsel %vm875, %v837, 0
      %v982 = vsel %vm875, %v838, 0
      %v985 = vsel %vm875, %v839, 0
      %v988 = vsel %vm875, %v840, 0
      %v991 = vsel %vm875, %v841, 0
      %v994 = vsel %vm875, %v842, 0
      %v997 = vsel %vm875, %v843, 0
      %v1000 = vsel %vm875, %v844, 0
      %v1003 = vsel %vm875, %v845, 0
      %v1006 = vsel %vm875, %v846, 0
      %v1009 = vsel %vm875, %v847, 0
      %v1012 = vsel %vm875, %v848, 0
      %v1015 = vsel %vm875, %v849, 0
      %v1018 = vsel %vm875, %v850, 0
      %v1021 = vsel %vm875, %v851, 0
      %v1024 = vsel %vm875, %v852, 0
      %v1027 = vsel %vm875, %v853, 0
      %v1030 = vsel %vm875, %v854, 0
      %v1033 = vsel %vm875, %v855, 0
      %v1036 = vsel %vm875, %v856, 0
      %v1039 = vsel %vm875, %v857, 0
      %v1042 = vsel %vm875, %v858, 0
      %v1045 = vsel %vm875, %v859, 0
      %v1048 = vsel %vm875, %v860, 0
      %v1051 = vsel %vm875, %v861, 0
      %v1054 = vsel %vm875, %v862, 0
      %v1057 = vsel %vm875, %v863, 0
      %v1060 = vsel %vm875, %v864, 0
      %v1063 = vsel %vm875, %v865, 0
      %v1066 = vsel %vm875, %v866, 0
      %1068 = vmatprep.subr.mxu0 0.0
      %1069 = vmatpush1.msra.mxu0 %v867
      %1070 = vmatprep.subr.mxu0 0.0
      %1071 = vmatpush1.msra.mxu0 %v868
      %1072 = vmatprep.subr.mxu0 0.0
      %1073 = vmatpush1.msra.mxu0 %v869
      %1074 = vmatprep.subr.mxu0 0.0
      %1075 = vmatpush1.msra.mxu0 0.0
      %1076 = vmatprep.subr.mxu0 0.0
      %1077 = vmatpush1.msra.mxu0 0.0
      %1078 = vmatprep.subr.mxu0 0.0
      %1079 = vmatpush1.msra.mxu0 0.0
      %1080 = vmatprep.subr.mxu0 0.0
      %1081 = vmatpush1.msra.mxu0 0.0
      %1082 = vmatprep.subr.mxu0 0.0
      %1083 = vmatpush1.msra.mxu0 0.0
      %1084 = vmatprep.subr.mxu0 0.0
      %1085 = vmatpush1.msra.mxu0 0.0
      %1086 = vmatprep.subr.mxu0 0.0
      %1087 = vmatpush1.msra.mxu0 0.0
      %1088 = vmatprep.subr.mxu0 0.0
      %1089 = vmatpush1.msra.mxu0 0.0
      %1090 = vmatprep.subr.mxu0 0.0
      %1091 = vmatpush1.msra.mxu0 0.0
      %1092 = vmatprep.subr.mxu0 0.0
      %1093 = vmatpush1.msra.mxu0 0.0
      %1094 = vmatprep.subr.mxu0 0.0
      %1095 = vmatpush1.msra.mxu0 0.0
      %1096 = vmatprep.subr.mxu0 0.0
      %1097 = vmatpush1.msra.mxu0 0.0
      %1098 = vmatprep.subr.mxu0 0.0
      %1099 = vmatpush1.msra.mxu0 0.0
      %1100 = vmatprep.subr.mxu0 0.0
      %1101 = vmatpush1.msra.mxu0 0.0
      %1102 = vmatprep.subr.mxu0 0.0
      %1103 = vmatpush1.msra.mxu0 0.0
      %1104 = vmatprep.subr.mxu0 0.0
      %1105 = vmatpush1.msra.mxu0 0.0
      %1106 = vmatprep.subr.mxu0 0.0
      %1107 = vmatpush1.msra.mxu0 0.0
      %1108 = vmatprep.subr.mxu0 0.0
      %1109 = vmatpush1.msra.mxu0 0.0
      %1110 = vmatprep.subr.mxu0 0.0
      %1111 = vmatpush1.msra.mxu0 0.0
      %1112 = vmatprep.subr.mxu0 0.0
      %1113 = vmatpush1.msra.mxu0 0.0
      %1114 = vmatprep.subr.mxu0 0.0
      %1115 = vmatpush1.msra.mxu0 0.0
      %1116 = vmatprep.subr.mxu0 0.0
      %1117 = vmatpush1.msra.mxu0 0.0
      %1118 = vmatprep.subr.mxu0 0.0
      %1119 = vmatpush1.msra.mxu0 0.0
      %1120 = vmatprep.subr.mxu0 0.0
      %1121 = vmatpush1.msra.mxu0 0.0
      %1122 = vmatprep.subr.mxu0 0.0
      %1123 = vmatpush1.msra.mxu0 0.0
      %1124 = vmatprep.subr.mxu0 0.0
      %1125 = vmatpush1.msra.mxu0 0.0
      %1126 = vmatprep.subr.mxu0 0.0
      %1127 = vmatpush1.msra.mxu0 0.0
      %1128 = vmatprep.subr.mxu0 0.0
      %1129 = vmatpush1.msra.mxu0 0.0
      %1130 = vmatprep.subr.mxu0 0.0
      %1131 = vmatpush1.msra.mxu0 0.0
      %1132 = vmatprep.mubr.f32.mxu0 0.0
      %1133 = vmatmul.mubr.f32.gmra.mrb[0].mxu0 %v877
      %v1134 = vpop.f32.mrb[0].mxu0
      %v1135 = vadd.f32 %v874, %v1134
      %v1136 = vpop.f32.mrb[0].mxu0
      %1137 = vmatprep.mubr.f32.mxu0 0.0
      %1138 = vmatmul.mubr.f32.gmra.mrb[0].mxu0 %v880
      %v1139 = vpop.f32.mrb[0].mxu0
      %v1140 = vadd.f32 %v874, %v1139
      %v1141 = vpop.f32.mrb[0].mxu0
      %1142 = vmatprep.mubr.f32.mxu0 0.0
      %1143 = vmatmul.mubr.f32.gmra.mrb[0].mxu0 %v883
      %v1144 = vpop.f32.mrb[0].mxu0
      %v1145 = vadd.f32 %v874, %v1144
      %v1146 = vpop.f32.mrb[0].mxu0
      %1147 = vmatprep.mubr.f32.mxu0 0.0
      %1148 = vmatmul.mubr.f32.gmra.mrb[0].mxu0 %v886
      %v1149 = vpop.f32.mrb[0].mxu0
      %v1150 = vadd.f32 %v874, %v1149
      %v1151 = vpop.f32.mrb[0].mxu0
      %1152 = vmatprep.mubr.f32.mxu0 0.0
      %1153 = vmatmul.mubr.f32.gmra.mrb[0].mxu0 %v889
      %v1154 = vpop.f32.mrb[0].mxu0
      %v1155 = vadd.f32 %v874, %v1154
      %v1156 = vpop.f32.mrb[0].mxu0
      %1157 = vmatprep.mubr.f32.mxu0 0.0
      %1158 = vmatmul.mubr.f32.gmra.mrb[0].mxu0 %v892
      %v1159 = vpop.f32.mrb[0].mxu0
      %v1160 = vadd.f32 %v874, %v1159
      %v1161 = vpop.f32.mrb[0].mxu0
      %1162 = vmatprep.mubr.f32.mxu0 0.0
      %1163 = vmatmul.mubr.f32.gmra.mrb[0].mxu0 %v895
      %v1164 = vpop.f32.mrb[0].mxu0
      %v1165 = vadd.f32 %v874, %v1164
      %v1166 = vpop.f32.mrb[0].mxu0
      %1167 = vmatprep.mubr.f32.mxu0 0.0
      %1168 = vmatmul.mubr.f32.gmra.mrb[0].mxu0 %v898
      %v1169 = vpop.f32.mrb[0].mxu0
      %v1170 = vadd.f32 %v874, %v1169
      %v1171 = vpop.f32.mrb[0].mxu0
      %1172 = vmatprep.mubr.f32.mxu0 0.0
      %1173 = vmatmul.mubr.f32.gmra.mrb[0].mxu0 %v901
      %v1174 = vpop.f32.mrb[0].mxu0
      %v1175 = vadd.f32 %v874, %v1174
      %v1176 = vpop.f32.mrb[0].mxu0
      %1177 = vmatprep.mubr.f32.mxu0 0.0
      %1178 = vmatmul.mubr.f32.gmra.mrb[0].mxu0 %v904
      %v1179 = vpop.f32.mrb[0].mxu0
      %v1180 = vadd.f32 %v874, %v1179
      %v1181 = vpop.f32.mrb[0].mxu0
      %1182 = vmatprep.mubr.f32.mxu0 0.0
      %1183 = vmatmul.mubr.f32.gmra.mrb[0].mxu0 %v907
      %v1184 = vpop.f32.mrb[0].mxu0
      %v1185 = vadd.f32 %v874, %v1184
      %v1186 = vpop.f32.mrb[0].mxu0
      %1187 = vmatprep.mubr.f32.mxu0 0.0
      %1188 = vmatmul.mubr.f32.gmra.mrb[0].mxu0 %v910
      %v1189 = vpop.f32.mrb[0].mxu0
      %v1190 = vadd.f32 %v874, %v1189
      %v1191 = vpop.f32.mrb[0].mxu0
      %1192 = vmatprep.mubr.f32.mxu0 0.0
      %1193 = vmatmul.mubr.f32.gmra.mrb[0].mxu0 %v913
      %v1194 = vpop.f32.mrb[0].mxu0
      %v1195 = vadd.f32 %v874, %v1194
      %v1196 = vpop.f32.mrb[0].mxu0
      %1197 = vmatprep.mubr.f32.mxu0 0.0
      %1198 = vmatmul.mubr.f32.gmra.mrb[0].mxu0 %v916
      %v1199 = vpop.f32.mrb[0].mxu0
      %v1200 = vadd.f32 %v874, %v1199
      %v1201 = vpop.f32.mrb[0].mxu0
      %1202 = vmatprep.mubr.f32.mxu0 0.0
      %1203 = vmatmul.mubr.f32.gmra.mrb[0].mxu0 %v919
      %v1204 = vpop.f32.mrb[0].mxu0
      %v1205 = vadd.f32 %v874, %v1204
      %v1206 = vpop.f32.mrb[0].mxu0
      %1207 = vmatprep.mubr.f32.mxu0 0.0
      %1208 = vmatmul.mubr.f32.gmra.mrb[0].mxu0 %v922
      %v1209 = vpop.f32.mrb[0].mxu0
      %v1210 = vadd.f32 %v874, %v1209
      %v1211 = vpop.f32.mrb[0].mxu0
      %1212 = vmatprep.mubr.f32.mxu0 0.0
      %1213 = vmatmul.mubr.f32.gmra.mrb[0].mxu0 %v925
      %v1214 = vpop.f32.mrb[0].mxu0
      %v1215 = vadd.f32 %v874, %v1214
      %v1216 = vpop.f32.mrb[0].mxu0
      %1217 = vmatprep.mubr.f32.mxu0 0.0
      %1218 = vmatmul.mubr.f32.gmra.mrb[0].mxu0 %v928
      %v1219 = vpop.f32.mrb[0].mxu0
      %v1220 = vadd.f32 %v874, %v1219
      %v1221 = vpop.f32.mrb[0].mxu0
      %1222 = vmatprep.mubr.f32.mxu0 0.0
      %1223 = vmatmul.mubr.f32.gmra.mrb[0].mxu0 %v931
      %v1224 = vpop.f32.mrb[0].mxu0
      %v1225 = vadd.f32 %v874, %v1224
      %v1226 = vpop.f32.mrb[0].mxu0
      %1227 = vmatprep.mubr.f32.mxu0 0.0
      %1228 = vmatmul.mubr.f32.gmra.mrb[0].mxu0 %v934
      %v1229 = vpop.f32.mrb[0].mxu0
      %v1230 = vadd.f32 %v874, %v1229
      %v1231 = vpop.f32.mrb[0].mxu0
      %1232 = vmatprep.mubr.f32.mxu0 0.0
      %1233 = vmatmul.mubr.f32.gmra.mrb[0].mxu0 %v937
      %v1234 = vpop.f32.mrb[0].mxu0
      %v1235 = vadd.f32 %v874, %v1234
      %v1236 = vpop.f32.mrb[0].mxu0
      %1237 = vmatprep.mubr.f32.mxu0 0.0
      %1238 = vmatmul.mubr.f32.gmra.mrb[0].mxu0 %v940
      %v1239 = vpop.f32.mrb[0].mxu0
      %v1240 = vadd.f32 %v874, %v1239
      %v1241 = vpop.f32.mrb[0].mxu0
      %1242 = vmatprep.mubr.f32.mxu0 0.0
      %1243 = vmatmul.mubr.f32.gmra.mrb[0].mxu0 %v943
      %v1244 = vpop.f32.mrb[0].mxu0
      %v1245 = vadd.f32 %v874, %v1244
      %v1246 = vpop.f32.mrb[0].mxu0
      %1247 = vmatprep.mubr.f32.mxu0 0.0
      %1248 = vmatmul.mubr.f32.gmra.mrb[0].mxu0 %v946
      %v1249 = vpop.f32.mrb[0].mxu0
      %v1250 = vadd.f32 %v874, %v1249
      %v1251 = vpop.f32.mrb[0].mxu0
      %1252 = vmatprep.mubr.f32.mxu0 0.0
      %1253 = vmatmul.mubr.f32.gmra.mrb[0].mxu0 %v949
      %v1254 = vpop.f32.mrb[0].mxu0
      %v1255 = vadd.f32 %v874, %v1254
      %v1256 = vpop.f32.mrb[0].mxu0
      %1257 = vmatprep.mubr.f32.mxu0 0.0
      %1258 = vmatmul.mubr.f32.gmra.mrb[0].mxu0 %v952
      %v1259 = vpop.f32.mrb[0].mxu0
      %v1260 = vadd.f32 %v874, %v1259
      %v1261 = vpop.f32.mrb[0].mxu0
      %1262 = vmatprep.mubr.f32.mxu0 0.0
      %1263 = vmatmul.mubr.f32.gmra.mrb[0].mxu0 %v955
      %v1264 = vpop.f32.mrb[0].mxu0
      %v1265 = vadd.f32 %v874, %v1264
      %v1266 = vpop.f32.mrb[0].mxu0
      %1267 = vmatprep.mubr.f32.mxu0 0.0
      %1268 = vmatmul.mubr.f32.gmra.mrb[0].mxu0 %v958
      %v1269 = vpop.f32.mrb[0].mxu0
      %v1270 = vadd.f32 %v874, %v1269
      %v1271 = vpop.f32.mrb[0].mxu0
      %1272 = vmatprep.mubr.f32.mxu0 0.0
      %1273 = vmatmul.mubr.f32.gmra.mrb[0].mxu0 %v961
      %v1274 = vpop.f32.mrb[0].mxu0
      %v1275 = vadd.f32 %v874, %v1274
      %v1276 = vpop.f32.mrb[0].mxu0
      %1277 = vmatprep.mubr.f32.mxu0 0.0
      %1278 = vmatmul.mubr.f32.gmra.mrb[0].mxu0 %v964
      %v1279 = vpop.f32.mrb[0].mxu0
      %v1280 = vadd.f32 %v874, %v1279
      %v1281 = vpop.f32.mrb[0].mxu0
      %1282 = vmatprep.mubr.f32.mxu0 0.0
      %1283 = vmatmul.mubr.f32.gmra.mrb[0].mxu0 %v967
      %v1284 = vpop.f32.mrb[0].mxu0
      %v1285 = vadd.f32 %v874, %v1284
      %v1286 = vpop.f32.mrb[0].mxu0
      %1287 = vmatprep.mubr.f32.mxu0 0.0
      %1288 = vmatmul.mubr.f32.gmra.mrb[0].mxu0 %v970
      %v1289 = vpop.f32.mrb[0].mxu0
      %v1290 = vadd.f32 %v874, %v1289
      %v1291 = vpop.f32.mrb[0].mxu0
      %1292 = vmatprep.mubr.f32.mxu0 0.0
      %1293 = vmatmul.mubr.f32.gmra.mrb[0].mxu0 %v973
      %v1294 = vpop.f32.mrb[0].mxu0
      %v1295 = vadd.f32 %v874, %v1294
      %v1296 = vpop.f32.mrb[0].mxu0
      %1297 = vmatprep.mubr.f32.mxu0 0.0
      %1298 = vmatmul.mubr.f32.gmra.mrb[0].mxu0 %v976
      %v1299 = vpop.f32.mrb[0].mxu0
      %v1300 = vadd.f32 %v874, %v1299
      %v1301 = vpop.f32.mrb[0].mxu0
      %1302 = vmatprep.mubr.f32.mxu0 0.0
      %1303 = vmatmul.mubr.f32.gmra.mrb[0].mxu0 %v979
      %v1304 = vpop.f32.mrb[0].mxu0
      %v1305 = vadd.f32 %v874, %v1304
      %v1306 = vpop.f32.mrb[0].mxu0
      %1307 = vmatprep.mubr.f32.mxu0 0.0
      %1308 = vmatmul.mubr.f32.gmra.mrb[0].mxu0 %v982
      %v1309 = vpop.f32.mrb[0].mxu0
      %v1310 = vadd.f32 %v874, %v1309
      %v1311 = vpop.f32.mrb[0].mxu0
      %1312 = vmatprep.mubr.f32.mxu0 0.0
      %1313 = vmatmul.mubr.f32.gmra.mrb[0].mxu0 %v985
      %v1314 = vpop.f32.mrb[0].mxu0
      %v1315 = vadd.f32 %v874, %v1314
      %v1316 = vpop.f32.mrb[0].mxu0
      %1317 = vmatprep.mubr.f32.mxu0 0.0
      %1318 = vmatmul.mubr.f32.gmra.mrb[0].mxu0 %v988
      %v1319 = vpop.f32.mrb[0].mxu0
      %v1320 = vadd.f32 %v874, %v1319
      %v1321 = vpop.f32.mrb[0].mxu0
      %1322 = vmatprep.mubr.f32.mxu0 0.0
      %1323 = vmatmul.mubr.f32.gmra.mrb[0].mxu0 %v991
      %v1324 = vpop.f32.mrb[0].mxu0
      %v1325 = vadd.f32 %v874, %v1324
      %v1326 = vpop.f32.mrb[0].mxu0
      %1327 = vmatprep.mubr.f32.mxu0 0.0
      %1328 = vmatmul.mubr.f32.gmra.mrb[0].mxu0 %v994
      %v1329 = vpop.f32.mrb[0].mxu0
      %v1330 = vadd.f32 %v874, %v1329
      %v1331 = vpop.f32.mrb[0].mxu0
      %1332 = vmatprep.mubr.f32.mxu0 0.0
      %1333 = vmatmul.mubr.f32.gmra.mrb[0].mxu0 %v997
      %v1334 = vpop.f32.mrb[0].mxu0
      %v1335 = vadd.f32 %v874, %v1334
      %v1336 = vpop.f32.mrb[0].mxu0
      %1337 = vmatprep.mubr.f32.mxu0 0.0
      %1338 = vmatmul.mubr.f32.gmra.mrb[0].mxu0 %v1000
      %v1339 = vpop.f32.mrb[0].mxu0
      %v1340 = vadd.f32 %v874, %v1339
      %v1341 = vpop.f32.mrb[0].mxu0
      %1342 = vmatprep.mubr.f32.mxu0 0.0
      %1343 = vmatmul.mubr.f32.gmra.mrb[0].mxu0 %v1003
      %v1344 = vpop.f32.mrb[0].mxu0
      %v1345 = vadd.f32 %v874, %v1344
      %v1346 = vpop.f32.mrb[0].mxu0
      %1347 = vmatprep.mubr.f32.mxu0 0.0
      %1348 = vmatmul.mubr.f32.gmra.mrb[0].mxu0 %v1006
      %v1349 = vpop.f32.mrb[0].mxu0
      %v1350 = vadd.f32 %v874, %v1349
      %v1351 = vpop.f32.mrb[0].mxu0
      %1352 = vmatprep.mubr.f32.mxu0 0.0
      %1353 = vmatmul.mubr.f32.gmra.mrb[0].mxu0 %v1009
      %v1354 = vpop.f32.mrb[0].mxu0
      %v1355 = vadd.f32 %v874, %v1354
      %v1356 = vpop.f32.mrb[0].mxu0
      %1357 = vmatprep.mubr.f32.mxu0 0.0
      %1358 = vmatmul.mubr.f32.gmra.mrb[0].mxu0 %v1012
      %v1359 = vpop.f32.mrb[0].mxu0
      %v1360 = vadd.f32 %v874, %v1359
      %v1361 = vpop.f32.mrb[0].mxu0
      %1362 = vmatprep.mubr.f32.mxu0 0.0
      %1363 = vmatmul.mubr.f32.gmra.mrb[0].mxu0 %v1015
      %v1364 = vpop.f32.mrb[0].mxu0
      %v1365 = vadd.f32 %v874, %v1364
      %v1366 = vpop.f32.mrb[0].mxu0
      %1367 = vmatprep.mubr.f32.mxu0 0.0
      %1368 = vmatmul.mubr.f32.gmra.mrb[0].mxu0 %v1018
      %v1369 = vpop.f32.mrb[0].mxu0
      %v1370 = vadd.f32 %v874, %v1369
      %v1371 = vpop.f32.mrb[0].mxu0
      %1372 = vmatprep.mubr.f32.mxu0 0.0
      %1373 = vmatmul.mubr.f32.gmra.mrb[0].mxu0 %v1021
      %v1374 = vpop.f32.mrb[0].mxu0
      %v1375 = vadd.f32 %v874, %v1374
      %v1376 = vpop.f32.mrb[0].mxu0
      %1377 = vmatprep.mubr.f32.mxu0 0.0
      %1378 = vmatmul.mubr.f32.gmra.mrb[0].mxu0 %v1024
      %v1379 = vpop.f32.mrb[0].mxu0
      %v1380 = vadd.f32 %v874, %v1379
      %v1381 = vpop.f32.mrb[0].mxu0
      %1382 = vmatprep.mubr.f32.mxu0 0.0
      %1383 = vmatmul.mubr.f32.gmra.mrb[0].mxu0 %v1027
      %v1384 = vpop.f32.mrb[0].mxu0
      %v1385 = vadd.f32 %v874, %v1384
      %v1386 = vpop.f32.mrb[0].mxu0
      %1387 = vmatprep.mubr.f32.mxu0 0.0
      %1388 = vmatmul.mubr.f32.gmra.mrb[0].mxu0 %v1030
      %v1389 = vpop.f32.mrb[0].mxu0
      %v1390 = vadd.f32 %v874, %v1389
      %v1391 = vpop.f32.mrb[0].mxu0
      %1392 = vmatprep.mubr.f32.mxu0 0.0
      %1393 = vmatmul.mubr.f32.gmra.mrb[0].mxu0 %v1033
      %v1394 = vpop.f32.mrb[0].mxu0
      %v1395 = vadd.f32 %v874, %v1394
      %v1396 = vpop.f32.mrb[0].mxu0
      %1397 = vmatprep.mubr.f32.mxu0 0.0
      %1398 = vmatmul.mubr.f32.gmra.mrb[0].mxu0 %v1036
      %v1399 = vpop.f32.mrb[0].mxu0
      %v1400 = vadd.f32 %v874, %v1399
      %v1401 = vpop.f32.mrb[0].mxu0
      %1402 = vmatprep.mubr.f32.mxu0 0.0
      %1403 = vmatmul.mubr.f32.gmra.mrb[0].mxu0 %v1039
      %v1404 = vpop.f32.mrb[0].mxu0
      %v1405 = vadd.f32 %v874, %v1404
      %v1406 = vpop.f32.mrb[0].mxu0
      %1407 = vmatprep.mubr.f32.mxu0 0.0
      %1408 = vmatmul.mubr.f32.gmra.mrb[0].mxu0 %v1042
      %v1409 = vpop.f32.mrb[0].mxu0
      %v1410 = vadd.f32 %v874, %v1409
      %v1411 = vpop.f32.mrb[0].mxu0
      %1412 = vmatprep.mubr.f32.mxu0 0.0
      %1413 = vmatmul.mubr.f32.gmra.mrb[0].mxu0 %v1045
      %v1414 = vpop.f32.mrb[0].mxu0
      %v1415 = vadd.f32 %v874, %v1414
      %v1416 = vpop.f32.mrb[0].mxu0
      %1417 = vmatprep.mubr.f32.mxu0 0.0
      %1418 = vmatmul.mubr.f32.gmra.mrb[0].mxu0 %v1048
      %v1419 = vpop.f32.mrb[0].mxu0
      %v1420 = vadd.f32 %v874, %v1419
      %v1421 = vpop.f32.mrb[0].mxu0
      %1422 = vmatprep.mubr.f32.mxu0 0.0
      %1423 = vmatmul.mubr.f32.gmra.mrb[0].mxu0 %v1051
      %v1424 = vpop.f32.mrb[0].mxu0
      %v1425 = vadd.f32 %v874, %v1424
      %v1426 = vpop.f32.mrb[0].mxu0
      %1427 = vmatprep.mubr.f32.mxu0 0.0
      %1428 = vmatmul.mubr.f32.gmra.mrb[0].mxu0 %v1054
      %v1429 = vpop.f32.mrb[0].mxu0
      %v1430 = vadd.f32 %v874, %v1429
      %v1431 = vpop.f32.mrb[0].mxu0
      %1432 = vmatprep.mubr.f32.mxu0 0.0
      %1433 = vmatmul.mubr.f32.gmra.mrb[0].mxu0 %v1057
      %v1434 = vpop.f32.mrb[0].mxu0
      %v1435 = vadd.f32 %v874, %v1434
      %v1436 = vpop.f32.mrb[0].mxu0
      %1437 = vmatprep.mubr.f32.mxu0 0.0
      %1438 = vmatmul.mubr.f32.gmra.mrb[0].mxu0 %v1060
      %v1439 = vpop.f32.mrb[0].mxu0
      %v1440 = vadd.f32 %v874, %v1439
      %v1441 = vpop.f32.mrb[0].mxu0
      %1442 = vmatprep.mubr.f32.mxu0 0.0
      %1443 = vmatmul.mubr.f32.gmra.mrb[0].mxu0 %v1063
      %v1444 = vpop.f32.mrb[0].mxu0
      %v1445 = vadd.f32 %v874, %v1444
      %v1446 = vpop.f32.mrb[0].mxu0
      %1447 = vmatprep.mubr.f32.mxu0 0.0
      %1448 = vmatmul.mubr.f32.gmra.mrb[0].mxu0 %v1066
      %v1449 = vpop.f32.mrb[0].mxu0
      %v1450 = vadd.f32 %v874, %v1449
      %v1451 = vpop.f32.mrb[0].mxu0
      %1452 = vdwg.mxu0
      %v1453 = vmax.f32 %v1135, 0.0
      %v1454 = vmax.f32 %v1140, 0.0
      %v1455 = vmax.f32 %v1145, 0.0
      %v1456 = vmax.f32 %v1150, 0.0
      %v1457 = vmax.f32 %v1155, 0.0
      %v1458 = vmax.f32 %v1160, 0.0
      %v1459 = vmax.f32 %v1165, 0.0
      %v1460 = vmax.f32 %v1170, 0.0
      %v1461 = vmax.f32 %v1175, 0.0
      %v1462 = vmax.f32 %v1180, 0.0
      %v1463 = vmax.f32 %v1185, 0.0
      %v1464 = vmax.f32 %v1190, 0.0
      %v1465 = vmax.f32 %v1195, 0.0
      %v1466 = vmax.f32 %v1200, 0.0
      %v1467 = vmax.f32 %v1205, 0.0
      %v1468 = vmax.f32 %v1210, 0.0
      %v1469 = vmax.f32 %v1215, 0.0
      %v1470 = vmax.f32 %v1220, 0.0
      %v1471 = vmax.f32 %v1225, 0.0
      %v1472 = vmax.f32 %v1230, 0.0
      %v1473 = vmax.f32 %v1235, 0.0
      %v1474 = vmax.f32 %v1240, 0.0
      %v1475 = vmax.f32 %v1245, 0.0
      %v1476 = vmax.f32 %v1250, 0.0
      %v1477 = vmax.f32 %v1255, 0.0
      %v1478 = vmax.f32 %v1260, 0.0
      %v1479 = vmax.f32 %v1265, 0.0
      %v1480 = vmax.f32 %v1270, 0.0
      %v1481 = vmax.f32 %v1275, 0.0
      %v1482 = vmax.f32 %v1280, 0.0
      %v1483 = vmax.f32 %v1285, 0.0
      %v1484 = vmax.f32 %v1290, 0.0
      %v1485 = vmax.f32 %v1295, 0.0
      %v1486 = vmax.f32 %v1300, 0.0
      %v1487 = vmax.f32 %v1305, 0.0
      %v1488 = vmax.f32 %v1310, 0.0
      %v1489 = vmax.f32 %v1315, 0.0
      %v1490 = vmax.f32 %v1320, 0.0
      %v1491 = vmax.f32 %v1325, 0.0
      %v1492 = vmax.f32 %v1330, 0.0
      %v1493 = vmax.f32 %v1335, 0.0
      %v1494 = vmax.f32 %v1340, 0.0
      %v1495 = vmax.f32 %v1345, 0.0
      %v1496 = vmax.f32 %v1350, 0.0
      %v1497 = vmax.f32 %v1355, 0.0
      %v1498 = vmax.f32 %v1360, 0.0
      %v1499 = vmax.f32 %v1365, 0.0
      %v1500 = vmax.f32 %v1370, 0.0
      %v1501 = vmax.f32 %v1375, 0.0
      %v1502 = vmax.f32 %v1380, 0.0
      %v1503 = vmax.f32 %v1385, 0.0
      %v1504 = vmax.f32 %v1390, 0.0
      %v1505 = vmax.f32 %v1395, 0.0
      %v1506 = vmax.f32 %v1400, 0.0
      %v1507 = vmax.f32 %v1405, 0.0
      %v1508 = vmax.f32 %v1410, 0.0
      %v1509 = vmax.f32 %v1415, 0.0
      %v1510 = vmax.f32 %v1420, 0.0
      %v1511 = vmax.f32 %v1425, 0.0
      %v1512 = vmax.f32 %v1430, 0.0
      %v1513 = vmax.f32 %v1435, 0.0
      %v1514 = vmax.f32 %v1440, 0.0
      %v1515 = vmax.f32 %v1445, 0.0
      %v1516 = vmax.f32 %v1450, 0.0
      %v1517 = vld [vmem:[%s1 + $0x60] sm:$0xff]
      %v1518 = vld [vmem:[%s1 + $0x68] sm:$0xff]
      %v1519 = vld [vmem:[%s1 + $0x98] sm:$0x1]
      %v1520 = vlaneseq
      %v1521 = vshrl.u32 %v1520, 7
      %v1522 = vsub.s32 0, %v1521
      %v1523 = vrot.slane %v1519, %v1522
      %vm1524 = vcmask 130048
      %v1526 = vsel %vm1524, %v1453, 0
      %v1529 = vsel %vm1524, %v1454, 0
      %v1532 = vsel %vm1524, %v1455, 0
      %v1535 = vsel %vm1524, %v1456, 0
      %v1538 = vsel %vm1524, %v1457, 0
      %v1541 = vsel %vm1524, %v1458, 0
      %v1544 = vsel %vm1524, %v1459, 0
      %v1547 = vsel %vm1524, %v1460, 0
      %v1550 = vsel %vm1524, %v1461, 0
      %v1553 = vsel %vm1524, %v1462, 0
      %v1556 = vsel %vm1524, %v1463, 0
      %v1559 = vsel %vm1524, %v1464, 0
      %v1562 = vsel %vm1524, %v1465, 0
      %v1565 = vsel %vm1524, %v1466, 0
      %v1568 = vsel %vm1524, %v1467, 0
      %v1571 = vsel %vm1524, %v1468, 0
      %v1574 = vsel %vm1524, %v1469, 0
      %v1577 = vsel %vm1524, %v1470, 0
      %v1580 = vsel %vm1524, %v1471, 0
      %v1583 = vsel %vm1524, %v1472, 0
      %v1586 = vsel %vm1524, %v1473, 0
      %v1589 = vsel %vm1524, %v1474, 0
      %v1592 = vsel %vm1524, %v1475, 0
      %v1595 = vsel %vm1524, %v1476, 0
      %v1598 = vsel %vm1524, %v1477, 0
      %v1601 = vsel %vm1524, %v1478, 0
      %v1604 = vsel %vm1524, %v1479, 0
      %v1607 = vsel %vm1524, %v1480, 0
      %v1610 = vsel %vm1524, %v1481, 0
      %v1613 = vsel %vm1524, %v1482, 0
      %v1616 = vsel %vm1524, %v1483, 0
      %v1619 = vsel %vm1524, %v1484, 0
      %v1622 = vsel %vm1524, %v1485, 0
      %v1625 = vsel %vm1524, %v1486, 0
      %v1628 = vsel %vm1524, %v1487, 0
      %v1631 = vsel %vm1524, %v1488, 0
      %v1634 = vsel %vm1524, %v1489, 0
      %v1637 = vsel %vm1524, %v1490, 0
      %v1640 = vsel %vm1524, %v1491, 0
      %v1643 = vsel %vm1524, %v1492, 0
      %v1646 = vsel %vm1524, %v1493, 0
      %v1649 = vsel %vm1524, %v1494, 0
      %v1652 = vsel %vm1524, %v1495, 0
      %v1655 = vsel %vm1524, %v1496, 0
      %v1658 = vsel %vm1524, %v1497, 0
      %v1661 = vsel %vm1524, %v1498, 0
      %v1664 = vsel %vm1524, %v1499, 0
      %v1667 = vsel %vm1524, %v1500, 0
      %v1670 = vsel %vm1524, %v1501, 0
      %v1673 = vsel %vm1524, %v1502, 0
      %v1676 = vsel %vm1524, %v1503, 0
      %v1679 = vsel %vm1524, %v1504, 0
      %v1682 = vsel %vm1524, %v1505, 0
      %v1685 = vsel %vm1524, %v1506, 0
      %v1688 = vsel %vm1524, %v1507, 0
      %v1691 = vsel %vm1524, %v1508, 0
      %v1694 = vsel %vm1524, %v1509, 0
      %v1697 = vsel %vm1524, %v1510, 0
      %v1700 = vsel %vm1524, %v1511, 0
      %v1703 = vsel %vm1524, %v1512, 0
      %v1706 = vsel %vm1524, %v1513, 0
      %v1709 = vsel %vm1524, %v1514, 0
      %v1712 = vsel %vm1524, %v1515, 0
      %v1715 = vsel %vm1524, %v1516, 0
      %1717 = vmatprep.subr.mxu0 0.0
      %1718 = vmatpush1.msra.mxu0 %v1517
      %1719 = vmatprep.subr.mxu0 0.0
      %1720 = vmatpush1.msra.mxu0 %v1518
      %1721 = vmatprep.subr.mxu0 0.0
      %1722 = vmatpush1.msra.mxu0 0.0
      %1723 = vmatprep.subr.mxu0 0.0
      %1724 = vmatpush1.msra.mxu0 0.0
      %1725 = vmatprep.subr.mxu0 0.0
      %1726 = vmatpush1.msra.mxu0 0.0
      %1727 = vmatprep.subr.mxu0 0.0
      %1728 = vmatpush1.msra.mxu0 0.0
      %1729 = vmatprep.subr.mxu0 0.0
      %1730 = vmatpush1.msra.mxu0 0.0
      %1731 = vmatprep.subr.mxu0 0.0
      %1732 = vmatpush1.msra.mxu0 0.0
      %1733 = vmatprep.subr.mxu0 0.0
      %1734 = vmatpush1.msra.mxu0 0.0
      %1735 = vmatprep.subr.mxu0 0.0
      %1736 = vmatpush1.msra.mxu0 0.0
      %1737 = vmatprep.subr.mxu0 0.0
      %1738 = vmatpush1.msra.mxu0 0.0
      %1739 = vmatprep.subr.mxu0 0.0
      %1740 = vmatpush1.msra.mxu0 0.0
      %1741 = vmatprep.subr.mxu0 0.0
      %1742 = vmatpush1.msra.mxu0 0.0
      %1743 = vmatprep.subr.mxu0 0.0
      %1744 = vmatpush1.msra.mxu0 0.0
      %1745 = vmatprep.subr.mxu0 0.0
      %1746 = vmatpush1.msra.mxu0 0.0
      %1747 = vmatprep.subr.mxu0 0.0
      %1748 = vmatpush1.msra.mxu0 0.0
      %1749 = vmatprep.subr.mxu0 0.0
      %1750 = vmatpush1.msra.mxu0 0.0
      %1751 = vmatprep.subr.mxu0 0.0
      %1752 = vmatpush1.msra.mxu0 0.0
      %1753 = vmatprep.subr.mxu0 0.0
      %1754 = vmatpush1.msra.mxu0 0.0
      %1755 = vmatprep.subr.mxu0 0.0
      %1756 = vmatpush1.msra.mxu0 0.0
      %1757 = vmatprep.subr.mxu0 0.0
      %1758 = vmatpush1.msra.mxu0 0.0
      %1759 = vmatprep.subr.mxu0 0.0
      %1760 = vmatpush1.msra.mxu0 0.0
      %1761 = vmatprep.subr.mxu0 0.0
      %1762 = vmatpush1.msra.mxu0 0.0
      %1763 = vmatprep.subr.mxu0 0.0
      %1764 = vmatpush1.msra.mxu0 0.0
      %1765 = vmatprep.subr.mxu0 0.0
      %1766 = vmatpush1.msra.mxu0 0.0
      %1767 = vmatprep.subr.mxu0 0.0
      %1768 = vmatpush1.msra.mxu0 0.0
      %1769 = vmatprep.subr.mxu0 0.0
      %1770 = vmatpush1.msra.mxu0 0.0
      %1771 = vmatprep.subr.mxu0 0.0
      %1772 = vmatpush1.msra.mxu0 0.0
      %1773 = vmatprep.subr.mxu0 0.0
      %1774 = vmatpush1.msra.mxu0 0.0
      %1775 = vmatprep.subr.mxu0 0.0
      %1776 = vmatpush1.msra.mxu0 0.0
      %1777 = vmatprep.subr.mxu0 0.0
      %1778 = vmatpush1.msra.mxu0 0.0
      %1779 = vmatprep.subr.mxu0 0.0
      %1780 = vmatpush1.msra.mxu0 0.0
      %1781 = vmatprep.mubr.f32.mxu0 0.0
      %1782 = vmatmul.mubr.f32.gmra.mrb[0].mxu0 %v1526
      %v1783 = vpop.f32.mrb[0].mxu0
      %v1784 = vadd.f32 %v1523, %v1783
      %v1785 = vpop.f32.mrb[0].mxu0
      %1786 = vmatprep.mubr.f32.mxu0 0.0
      %1787 = vmatmul.mubr.f32.gmra.mrb[0].mxu0 %v1529
      %v1788 = vpop.f32.mrb[0].mxu0
      %v1789 = vadd.f32 %v1523, %v1788
      %v1790 = vpop.f32.mrb[0].mxu0
      %1791 = vmatprep.mubr.f32.mxu0 0.0
      %1792 = vmatmul.mubr.f32.gmra.mrb[0].mxu0 %v1532
      %v1793 = vpop.f32.mrb[0].mxu0
      %v1794 = vadd.f32 %v1523, %v1793
      %v1795 = vpop.f32.mrb[0].mxu0
      %1796 = vmatprep.mubr.f32.mxu0 0.0
      %1797 = vmatmul.mubr.f32.gmra.mrb[0].mxu0 %v1535
      %v1798 = vpop.f32.mrb[0].mxu0
      %v1799 = vadd.f32 %v1523, %v1798
      %v1800 = vpop.f32.mrb[0].mxu0
      %1801 = vmatprep.mubr.f32.mxu0 0.0
      %1802 = vmatmul.mubr.f32.gmra.mrb[0].mxu0 %v1538
      %v1803 = vpop.f32.mrb[0].mxu0
      %v1804 = vadd.f32 %v1523, %v1803
      %v1805 = vpop.f32.mrb[0].mxu0
      %1806 = vmatprep.mubr.f32.mxu0 0.0
      %1807 = vmatmul.mubr.f32.gmra.mrb[0].mxu0 %v1541
      %v1808 = vpop.f32.mrb[0].mxu0
      %v1809 = vadd.f32 %v1523, %v1808
      %v1810 = vpop.f32.mrb[0].mxu0
      %1811 = vmatprep.mubr.f32.mxu0 0.0
      %1812 = vmatmul.mubr.f32.gmra.mrb[0].mxu0 %v1544
      %v1813 = vpop.f32.mrb[0].mxu0
      %v1814 = vadd.f32 %v1523, %v1813
      %v1815 = vpop.f32.mrb[0].mxu0
      %1816 = vmatprep.mubr.f32.mxu0 0.0
      %1817 = vmatmul.mubr.f32.gmra.mrb[0].mxu0 %v1547
      %v1818 = vpop.f32.mrb[0].mxu0
      %v1819 = vadd.f32 %v1523, %v1818
      %v1820 = vpop.f32.mrb[0].mxu0
      %1821 = vmatprep.mubr.f32.mxu0 0.0
      %1822 = vmatmul.mubr.f32.gmra.mrb[0].mxu0 %v1550
      %v1823 = vpop.f32.mrb[0].mxu0
      %v1824 = vadd.f32 %v1523, %v1823
      %v1825 = vpop.f32.mrb[0].mxu0
      %1826 = vmatprep.mubr.f32.mxu0 0.0
      %1827 = vmatmul.mubr.f32.gmra.mrb[0].mxu0 %v1553
      %v1828 = vpop.f32.mrb[0].mxu0
      %v1829 = vadd.f32 %v1523, %v1828
      %v1830 = vpop.f32.mrb[0].mxu0
      %1831 = vmatprep.mubr.f32.mxu0 0.0
      %1832 = vmatmul.mubr.f32.gmra.mrb[0].mxu0 %v1556
      %v1833 = vpop.f32.mrb[0].mxu0
      %v1834 = vadd.f32 %v1523, %v1833
      %v1835 = vpop.f32.mrb[0].mxu0
      %1836 = vmatprep.mubr.f32.mxu0 0.0
      %1837 = vmatmul.mubr.f32.gmra.mrb[0].mxu0 %v1559
      %v1838 = vpop.f32.mrb[0].mxu0
      %v1839 = vadd.f32 %v1523, %v1838
      %v1840 = vpop.f32.mrb[0].mxu0
      %1841 = vmatprep.mubr.f32.mxu0 0.0
      %1842 = vmatmul.mubr.f32.gmra.mrb[0].mxu0 %v1562
      %v1843 = vpop.f32.mrb[0].mxu0
      %v1844 = vadd.f32 %v1523, %v1843
      %v1845 = vpop.f32.mrb[0].mxu0
      %1846 = vmatprep.mubr.f32.mxu0 0.0
      %1847 = vmatmul.mubr.f32.gmra.mrb[0].mxu0 %v1565
      %v1848 = vpop.f32.mrb[0].mxu0
      %v1849 = vadd.f32 %v1523, %v1848
      %v1850 = vpop.f32.mrb[0].mxu0
      %1851 = vmatprep.mubr.f32.mxu0 0.0
      %1852 = vmatmul.mubr.f32.gmra.mrb[0].mxu0 %v1568
      %v1853 = vpop.f32.mrb[0].mxu0
      %v1854 = vadd.f32 %v1523, %v1853
      %v1855 = vpop.f32.mrb[0].mxu0
      %1856 = vmatprep.mubr.f32.mxu0 0.0
      %1857 = vmatmul.mubr.f32.gmra.mrb[0].mxu0 %v1571
      %v1858 = vpop.f32.mrb[0].mxu0
      %v1859 = vadd.f32 %v1523, %v1858
      %v1860 = vpop.f32.mrb[0].mxu0
      %1861 = vmatprep.mubr.f32.mxu0 0.0
      %1862 = vmatmul.mubr.f32.gmra.mrb[0].mxu0 %v1574
      %v1863 = vpop.f32.mrb[0].mxu0
      %v1864 = vadd.f32 %v1523, %v1863
      %v1865 = vpop.f32.mrb[0].mxu0
      %1866 = vmatprep.mubr.f32.mxu0 0.0
      %1867 = vmatmul.mubr.f32.gmra.mrb[0].mxu0 %v1577
      %v1868 = vpop.f32.mrb[0].mxu0
      %v1869 = vadd.f32 %v1523, %v1868
      %v1870 = vpop.f32.mrb[0].mxu0
      %1871 = vmatprep.mubr.f32.mxu0 0.0
      %1872 = vmatmul.mubr.f32.gmra.mrb[0].mxu0 %v1580
      %v1873 = vpop.f32.mrb[0].mxu0
      %v1874 = vadd.f32 %v1523, %v1873
      %v1875 = vpop.f32.mrb[0].mxu0
      %1876 = vmatprep.mubr.f32.mxu0 0.0
      %1877 = vmatmul.mubr.f32.gmra.mrb[0].mxu0 %v1583
      %v1878 = vpop.f32.mrb[0].mxu0
      %v1879 = vadd.f32 %v1523, %v1878
      %v1880 = vpop.f32.mrb[0].mxu0
      %1881 = vmatprep.mubr.f32.mxu0 0.0
      %1882 = vmatmul.mubr.f32.gmra.mrb[0].mxu0 %v1586
      %v1883 = vpop.f32.mrb[0].mxu0
      %v1884 = vadd.f32 %v1523, %v1883
      %v1885 = vpop.f32.mrb[0].mxu0
      %1886 = vmatprep.mubr.f32.mxu0 0.0
      %1887 = vmatmul.mubr.f32.gmra.mrb[0].mxu0 %v1589
      %v1888 = vpop.f32.mrb[0].mxu0
      %v1889 = vadd.f32 %v1523, %v1888
      %v1890 = vpop.f32.mrb[0].mxu0
      %1891 = vmatprep.mubr.f32.mxu0 0.0
      %1892 = vmatmul.mubr.f32.gmra.mrb[0].mxu0 %v1592
      %v1893 = vpop.f32.mrb[0].mxu0
      %v1894 = vadd.f32 %v1523, %v1893
      %v1895 = vpop.f32.mrb[0].mxu0
      %1896 = vmatprep.mubr.f32.mxu0 0.0
      %1897 = vmatmul.mubr.f32.gmra.mrb[0].mxu0 %v1595
      %v1898 = vpop.f32.mrb[0].mxu0
      %v1899 = vadd.f32 %v1523, %v1898
      %v1900 = vpop.f32.mrb[0].mxu0
      %1901 = vmatprep.mubr.f32.mxu0 0.0
      %1902 = vmatmul.mubr.f32.gmra.mrb[0].mxu0 %v1598
      %v1903 = vpop.f32.mrb[0].mxu0
      %v1904 = vadd.f32 %v1523, %v1903
      %v1905 = vpop.f32.mrb[0].mxu0
      %1906 = vmatprep.mubr.f32.mxu0 0.0
      %1907 = vmatmul.mubr.f32.gmra.mrb[0].mxu0 %v1601
      %v1908 = vpop.f32.mrb[0].mxu0
      %v1909 = vadd.f32 %v1523, %v1908
      %v1910 = vpop.f32.mrb[0].mxu0
      %1911 = vmatprep.mubr.f32.mxu0 0.0
      %1912 = vmatmul.mubr.f32.gmra.mrb[0].mxu0 %v1604
      %v1913 = vpop.f32.mrb[0].mxu0
      %v1914 = vadd.f32 %v1523, %v1913
      %v1915 = vpop.f32.mrb[0].mxu0
      %1916 = vmatprep.mubr.f32.mxu0 0.0
      %1917 = vmatmul.mubr.f32.gmra.mrb[0].mxu0 %v1607
      %v1918 = vpop.f32.mrb[0].mxu0
      %v1919 = vadd.f32 %v1523, %v1918
      %v1920 = vpop.f32.mrb[0].mxu0
      %1921 = vmatprep.mubr.f32.mxu0 0.0
      %1922 = vmatmul.mubr.f32.gmra.mrb[0].mxu0 %v1610
      %v1923 = vpop.f32.mrb[0].mxu0
      %v1924 = vadd.f32 %v1523, %v1923
      %v1925 = vpop.f32.mrb[0].mxu0
      %1926 = vmatprep.mubr.f32.mxu0 0.0
      %1927 = vmatmul.mubr.f32.gmra.mrb[0].mxu0 %v1613
      %v1928 = vpop.f32.mrb[0].mxu0
      %v1929 = vadd.f32 %v1523, %v1928
      %v1930 = vpop.f32.mrb[0].mxu0
      %1931 = vmatprep.mubr.f32.mxu0 0.0
      %1932 = vmatmul.mubr.f32.gmra.mrb[0].mxu0 %v1616
      %v1933 = vpop.f32.mrb[0].mxu0
      %v1934 = vadd.f32 %v1523, %v1933
      %v1935 = vpop.f32.mrb[0].mxu0
      %1936 = vmatprep.mubr.f32.mxu0 0.0
      %1937 = vmatmul.mubr.f32.gmra.mrb[0].mxu0 %v1619
      %v1938 = vpop.f32.mrb[0].mxu0
      %v1939 = vadd.f32 %v1523, %v1938
      %v1940 = vpop.f32.mrb[0].mxu0
      %1941 = vmatprep.mubr.f32.mxu0 0.0
      %1942 = vmatmul.mubr.f32.gmra.mrb[0].mxu0 %v1622
      %v1943 = vpop.f32.mrb[0].mxu0
      %v1944 = vadd.f32 %v1523, %v1943
      %v1945 = vpop.f32.mrb[0].mxu0
      %1946 = vmatprep.mubr.f32.mxu0 0.0
      %1947 = vmatmul.mubr.f32.gmra.mrb[0].mxu0 %v1625
      %v1948 = vpop.f32.mrb[0].mxu0
      %v1949 = vadd.f32 %v1523, %v1948
      %v1950 = vpop.f32.mrb[0].mxu0
      %1951 = vmatprep.mubr.f32.mxu0 0.0
      %1952 = vmatmul.mubr.f32.gmra.mrb[0].mxu0 %v1628
      %v1953 = vpop.f32.mrb[0].mxu0
      %v1954 = vadd.f32 %v1523, %v1953
      %v1955 = vpop.f32.mrb[0].mxu0
      %1956 = vmatprep.mubr.f32.mxu0 0.0
      %1957 = vmatmul.mubr.f32.gmra.mrb[0].mxu0 %v1631
      %v1958 = vpop.f32.mrb[0].mxu0
      %v1959 = vadd.f32 %v1523, %v1958
      %v1960 = vpop.f32.mrb[0].mxu0
      %1961 = vmatprep.mubr.f32.mxu0 0.0
      %1962 = vmatmul.mubr.f32.gmra.mrb[0].mxu0 %v1634
      %v1963 = vpop.f32.mrb[0].mxu0
      %v1964 = vadd.f32 %v1523, %v1963
      %v1965 = vpop.f32.mrb[0].mxu0
      %1966 = vmatprep.mubr.f32.mxu0 0.0
      %1967 = vmatmul.mubr.f32.gmra.mrb[0].mxu0 %v1637
      %v1968 = vpop.f32.mrb[0].mxu0
      %v1969 = vadd.f32 %v1523, %v1968
      %v1970 = vpop.f32.mrb[0].mxu0
      %1971 = vmatprep.mubr.f32.mxu0 0.0
      %1972 = vmatmul.mubr.f32.gmra.mrb[0].mxu0 %v1640
      %v1973 = vpop.f32.mrb[0].mxu0
      %v1974 = vadd.f32 %v1523, %v1973
      %v1975 = vpop.f32.mrb[0].mxu0
      %1976 = vmatprep.mubr.f32.mxu0 0.0
      %1977 = vmatmul.mubr.f32.gmra.mrb[0].mxu0 %v1643
      %v1978 = vpop.f32.mrb[0].mxu0
      %v1979 = vadd.f32 %v1523, %v1978
      %v1980 = vpop.f32.mrb[0].mxu0
      %1981 = vmatprep.mubr.f32.mxu0 0.0
      %1982 = vmatmul.mubr.f32.gmra.mrb[0].mxu0 %v1646
      %v1983 = vpop.f32.mrb[0].mxu0
      %v1984 = vadd.f32 %v1523, %v1983
      %v1985 = vpop.f32.mrb[0].mxu0
      %1986 = vmatprep.mubr.f32.mxu0 0.0
      %1987 = vmatmul.mubr.f32.gmra.mrb[0].mxu0 %v1649
      %v1988 = vpop.f32.mrb[0].mxu0
      %v1989 = vadd.f32 %v1523, %v1988
      %v1990 = vpop.f32.mrb[0].mxu0
      %1991 = vmatprep.mubr.f32.mxu0 0.0
      %1992 = vmatmul.mubr.f32.gmra.mrb[0].mxu0 %v1652
      %v1993 = vpop.f32.mrb[0].mxu0
      %v1994 = vadd.f32 %v1523, %v1993
      %v1995 = vpop.f32.mrb[0].mxu0
      %1996 = vmatprep.mubr.f32.mxu0 0.0
      %1997 = vmatmul.mubr.f32.gmra.mrb[0].mxu0 %v1655
      %v1998 = vpop.f32.mrb[0].mxu0
      %v1999 = vadd.f32 %v1523, %v1998
      %v2000 = vpop.f32.mrb[0].mxu0
      %2001 = vmatprep.mubr.f32.mxu0 0.0
      %2002 = vmatmul.mubr.f32.gmra.mrb[0].mxu0 %v1658
      %v2003 = vpop.f32.mrb[0].mxu0
      %v2004 = vadd.f32 %v1523, %v2003
      %v2005 = vpop.f32.mrb[0].mxu0
      %2006 = vmatprep.mubr.f32.mxu0 0.0
      %2007 = vmatmul.mubr.f32.gmra.mrb[0].mxu0 %v1661
      %v2008 = vpop.f32.mrb[0].mxu0
      %v2009 = vadd.f32 %v1523, %v2008
      %v2010 = vpop.f32.mrb[0].mxu0
      %2011 = vmatprep.mubr.f32.mxu0 0.0
      %2012 = vmatmul.mubr.f32.gmra.mrb[0].mxu0 %v1664
      %v2013 = vpop.f32.mrb[0].mxu0
      %v2014 = vadd.f32 %v1523, %v2013
      %v2015 = vpop.f32.mrb[0].mxu0
      %2016 = vmatprep.mubr.f32.mxu0 0.0
      %2017 = vmatmul.mubr.f32.gmra.mrb[0].mxu0 %v1667
      %v2018 = vpop.f32.mrb[0].mxu0
      %v2019 = vadd.f32 %v1523, %v2018
      %v2020 = vpop.f32.mrb[0].mxu0
      %2021 = vmatprep.mubr.f32.mxu0 0.0
      %2022 = vmatmul.mubr.f32.gmra.mrb[0].mxu0 %v1670
      %v2023 = vpop.f32.mrb[0].mxu0
      %v2024 = vadd.f32 %v1523, %v2023
      %v2025 = vpop.f32.mrb[0].mxu0
      %2026 = vmatprep.mubr.f32.mxu0 0.0
      %2027 = vmatmul.mubr.f32.gmra.mrb[0].mxu0 %v1673
      %v2028 = vpop.f32.mrb[0].mxu0
      %v2029 = vadd.f32 %v1523, %v2028
      %v2030 = vpop.f32.mrb[0].mxu0
      %2031 = vmatprep.mubr.f32.mxu0 0.0
      %2032 = vmatmul.mubr.f32.gmra.mrb[0].mxu0 %v1676
      %v2033 = vpop.f32.mrb[0].mxu0
      %v2034 = vadd.f32 %v1523, %v2033
      %v2035 = vpop.f32.mrb[0].mxu0
      %2036 = vmatprep.mubr.f32.mxu0 0.0
      %2037 = vmatmul.mubr.f32.gmra.mrb[0].mxu0 %v1679
      %v2038 = vpop.f32.mrb[0].mxu0
      %v2039 = vadd.f32 %v1523, %v2038
      %v2040 = vpop.f32.mrb[0].mxu0
      %2041 = vmatprep.mubr.f32.mxu0 0.0
      %2042 = vmatmul.mubr.f32.gmra.mrb[0].mxu0 %v1682
      %v2043 = vpop.f32.mrb[0].mxu0
      %v2044 = vadd.f32 %v1523, %v2043
      %v2045 = vpop.f32.mrb[0].mxu0
      %2046 = vmatprep.mubr.f32.mxu0 0.0
      %2047 = vmatmul.mubr.f32.gmra.mrb[0].mxu0 %v1685
      %v2048 = vpop.f32.mrb[0].mxu0
      %v2049 = vadd.f32 %v1523, %v2048
      %v2050 = vpop.f32.mrb[0].mxu0
      %2051 = vmatprep.mubr.f32.mxu0 0.0
      %2052 = vmatmul.mubr.f32.gmra.mrb[0].mxu0 %v1688
      %v2053 = vpop.f32.mrb[0].mxu0
      %v2054 = vadd.f32 %v1523, %v2053
      %v2055 = vpop.f32.mrb[0].mxu0
      %2056 = vmatprep.mubr.f32.mxu0 0.0
      %2057 = vmatmul.mubr.f32.gmra.mrb[0].mxu0 %v1691
      %v2058 = vpop.f32.mrb[0].mxu0
      %v2059 = vadd.f32 %v1523, %v2058
      %v2060 = vpop.f32.mrb[0].mxu0
      %2061 = vmatprep.mubr.f32.mxu0 0.0
      %2062 = vmatmul.mubr.f32.gmra.mrb[0].mxu0 %v1694
      %v2063 = vpop.f32.mrb[0].mxu0
      %v2064 = vadd.f32 %v1523, %v2063
      %v2065 = vpop.f32.mrb[0].mxu0
      %2066 = vmatprep.mubr.f32.mxu0 0.0
      %2067 = vmatmul.mubr.f32.gmra.mrb[0].mxu0 %v1697
      %v2068 = vpop.f32.mrb[0].mxu0
      %v2069 = vadd.f32 %v1523, %v2068
      %v2070 = vpop.f32.mrb[0].mxu0
      %2071 = vmatprep.mubr.f32.mxu0 0.0
      %2072 = vmatmul.mubr.f32.gmra.mrb[0].mxu0 %v1700
      %v2073 = vpop.f32.mrb[0].mxu0
      %v2074 = vadd.f32 %v1523, %v2073
      %v2075 = vpop.f32.mrb[0].mxu0
      %2076 = vmatprep.mubr.f32.mxu0 0.0
      %2077 = vmatmul.mubr.f32.gmra.mrb[0].mxu0 %v1703
      %v2078 = vpop.f32.mrb[0].mxu0
      %v2079 = vadd.f32 %v1523, %v2078
      %v2080 = vpop.f32.mrb[0].mxu0
      %2081 = vmatprep.mubr.f32.mxu0 0.0
      %2082 = vmatmul.mubr.f32.gmra.mrb[0].mxu0 %v1706
      %v2083 = vpop.f32.mrb[0].mxu0
      %v2084 = vadd.f32 %v1523, %v2083
      %v2085 = vpop.f32.mrb[0].mxu0
      %2086 = vmatprep.mubr.f32.mxu0 0.0
      %2087 = vmatmul.mubr.f32.gmra.mrb[0].mxu0 %v1709
      %v2088 = vpop.f32.mrb[0].mxu0
      %v2089 = vadd.f32 %v1523, %v2088
      %v2090 = vpop.f32.mrb[0].mxu0
      %2091 = vmatprep.mubr.f32.mxu0 0.0
      %2092 = vmatmul.mubr.f32.gmra.mrb[0].mxu0 %v1712
      %v2093 = vpop.f32.mrb[0].mxu0
      %v2094 = vadd.f32 %v1523, %v2093
      %v2095 = vpop.f32.mrb[0].mxu0
      %2096 = vmatprep.mubr.f32.mxu0 0.0
      %2097 = vmatmul.mubr.f32.gmra.mrb[0].mxu0 %v1715
      %v2098 = vpop.f32.mrb[0].mxu0
      %v2099 = vadd.f32 %v1523, %v2098
      %v2100 = vpop.f32.mrb[0].mxu0
      %2101 = vdwg.mxu0
      %v2102 = vmax.f32 %v1784, 0.0
      %v2103 = vmax.f32 %v1789, 0.0
      %v2104 = vmax.f32 %v1794, 0.0
      %v2105 = vmax.f32 %v1799, 0.0
      %v2106 = vmax.f32 %v1804, 0.0
      %v2107 = vmax.f32 %v1809, 0.0
      %v2108 = vmax.f32 %v1814, 0.0
      %v2109 = vmax.f32 %v1819, 0.0
      %v2110 = vmax.f32 %v1824, 0.0
      %v2111 = vmax.f32 %v1829, 0.0
      %v2112 = vmax.f32 %v1834, 0.0
      %v2113 = vmax.f32 %v1839, 0.0
      %v2114 = vmax.f32 %v1844, 0.0
      %v2115 = vmax.f32 %v1849, 0.0
      %v2116 = vmax.f32 %v1854, 0.0
      %v2117 = vmax.f32 %v1859, 0.0
      %v2118 = vmax.f32 %v1864, 0.0
      %v2119 = vmax.f32 %v1869, 0.0
      %v2120 = vmax.f32 %v1874, 0.0
      %v2121 = vmax.f32 %v1879, 0.0
      %v2122 = vmax.f32 %v1884, 0.0
      %v2123 = vmax.f32 %v1889, 0.0
      %v2124 = vmax.f32 %v1894, 0.0
      %v2125 = vmax.f32 %v1899, 0.0
      %v2126 = vmax.f32 %v1904, 0.0
      %v2127 = vmax.f32 %v1909, 0.0
      %v2128 = vmax.f32 %v1914, 0.0
      %v2129 = vmax.f32 %v1919, 0.0
      %v2130 = vmax.f32 %v1924, 0.0
      %v2131 = vmax.f32 %v1929, 0.0
      %v2132 = vmax.f32 %v1934, 0.0
      %v2133 = vmax.f32 %v1939, 0.0
      %v2134 = vmax.f32 %v1944, 0.0
      %v2135 = vmax.f32 %v1949, 0.0
      %v2136 = vmax.f32 %v1954, 0.0
      %v2137 = vmax.f32 %v1959, 0.0
      %v2138 = vmax.f32 %v1964, 0.0
      %v2139 = vmax.f32 %v1969, 0.0
      %v2140 = vmax.f32 %v1974, 0.0
      %v2141 = vmax.f32 %v1979, 0.0
      %v2142 = vmax.f32 %v1984, 0.0
      %v2143 = vmax.f32 %v1989, 0.0
      %v2144 = vmax.f32 %v1994, 0.0
      %v2145 = vmax.f32 %v1999, 0.0
      %v2146 = vmax.f32 %v2004, 0.0
      %v2147 = vmax.f32 %v2009, 0.0
      %v2148 = vmax.f32 %v2014, 0.0
      %v2149 = vmax.f32 %v2019, 0.0
      %v2150 = vmax.f32 %v2024, 0.0
      %v2151 = vmax.f32 %v2029, 0.0
      %v2152 = vmax.f32 %v2034, 0.0
      %v2153 = vmax.f32 %v2039, 0.0
      %v2154 = vmax.f32 %v2044, 0.0
      %v2155 = vmax.f32 %v2049, 0.0
      %v2156 = vmax.f32 %v2054, 0.0
      %v2157 = vmax.f32 %v2059, 0.0
      %v2158 = vmax.f32 %v2064, 0.0
      %v2159 = vmax.f32 %v2069, 0.0
      %v2160 = vmax.f32 %v2074, 0.0
      %v2161 = vmax.f32 %v2079, 0.0
      %v2162 = vmax.f32 %v2084, 0.0
      %v2163 = vmax.f32 %v2089, 0.0
      %v2164 = vmax.f32 %v2094, 0.0
      %v2165 = vmax.f32 %v2099, 0.0
      %v2166 = vld [vmem:[%s1 + $0x70] sm:$0xff]
      %v2167 = vld [vmem:[%s1 + $0x78] sm:$0xff]
      %v2168 = vld [vmem:[%s1 + $0x80] sm:$0xff]
      %v2169 = vld [vmem:[%s1 + $0xa0] sm:$0x1]
      %v2170 = vlaneseq
      %v2171 = vshrl.u32 %v2170, 7
      %v2172 = vsub.s32 0, %v2171
      %v2173 = vrot.slane %v2169, %v2172
      %v2175 = vsel %vm875, %v2102, 0
      %v2178 = vsel %vm875, %v2103, 0
      %v2181 = vsel %vm875, %v2104, 0
      %v2184 = vsel %vm875, %v2105, 0
      %v2187 = vsel %vm875, %v2106, 0
      %v2190 = vsel %vm875, %v2107, 0
      %v2193 = vsel %vm875, %v2108, 0
      %v2196 = vsel %vm875, %v2109, 0
      %v2199 = vsel %vm875, %v2110, 0
      %v2202 = vsel %vm875, %v2111, 0
      %v2205 = vsel %vm875, %v2112, 0
      %v2208 = vsel %vm875, %v2113, 0
      %v2211 = vsel %vm875, %v2114, 0
      %v2214 = vsel %vm875, %v2115, 0
      %v2217 = vsel %vm875, %v2116, 0
      %v2220 = vsel %vm875, %v2117, 0
      %v2223 = vsel %vm875, %v2118, 0
      %v2226 = vsel %vm875, %v2119, 0
      %v2229 = vsel %vm875, %v2120, 0
      %v2232 = vsel %vm875, %v2121, 0
      %v2235 = vsel %vm875, %v2122, 0
      %v2238 = vsel %vm875, %v2123, 0
      %v2241 = vsel %vm875, %v2124, 0
      %v2244 = vsel %vm875, %v2125, 0
      %v2247 = vsel %vm875, %v2126, 0
      %v2250 = vsel %vm875, %v2127, 0
      %v2253 = vsel %vm875, %v2128, 0
      %v2256 = vsel %vm875, %v2129, 0
      %v2259 = vsel %vm875, %v2130, 0
      %v2262 = vsel %vm875, %v2131, 0
      %v2265 = vsel %vm875, %v2132, 0
      %v2268 = vsel %vm875, %v2133, 0
      %v2271 = vsel %vm875, %v2134, 0
      %v2274 = vsel %vm875, %v2135, 0
      %v2277 = vsel %vm875, %v2136, 0
      %v2280 = vsel %vm875, %v2137, 0
      %v2283 = vsel %vm875, %v2138, 0
      %v2286 = vsel %vm875, %v2139, 0
      %v2289 = vsel %vm875, %v2140, 0
      %v2292 = vsel %vm875, %v2141, 0
      %v2295 = vsel %vm875, %v2142, 0
      %v2298 = vsel %vm875, %v2143, 0
      %v2301 = vsel %vm875, %v2144, 0
      %v2304 = vsel %vm875, %v2145, 0
      %v2307 = vsel %vm875, %v2146, 0
      %v2310 = vsel %vm875, %v2147, 0
      %v2313 = vsel %vm875, %v2148, 0
      %v2316 = vsel %vm875, %v2149, 0
      %v2319 = vsel %vm875, %v2150, 0
      %v2322 = vsel %vm875, %v2151, 0
      %v2325 = vsel %vm875, %v2152, 0
      %v2328 = vsel %vm875, %v2153, 0
      %v2331 = vsel %vm875, %v2154, 0
      %v2334 = vsel %vm875, %v2155, 0
      %v2337 = vsel %vm875, %v2156, 0
      %v2340 = vsel %vm875, %v2157, 0
      %v2343 = vsel %vm875, %v2158, 0
      %v2346 = vsel %vm875, %v2159, 0
      %v2349 = vsel %vm875, %v2160, 0
      %v2352 = vsel %vm875, %v2161, 0
      %v2355 = vsel %vm875, %v2162, 0
      %v2358 = vsel %vm875, %v2163, 0
      %v2361 = vsel %vm875, %v2164, 0
      %v2364 = vsel %vm875, %v2165, 0
      %2366 = vmatprep.subr.mxu0 0.0
      %2367 = vmatpush1.msra.mxu0 %v2166
      %2368 = vmatprep.subr.mxu0 0.0
      %2369 = vmatpush1.msra.mxu0 %v2167
      %2370 = vmatprep.subr.mxu0 0.0
      %2371 = vmatpush1.msra.mxu0 %v2168
      %2372 = vmatprep.subr.mxu0 0.0
      %2373 = vmatpush1.msra.mxu0 0.0
      %2374 = vmatprep.subr.mxu0 0.0
      %2375 = vmatpush1.msra.mxu0 0.0
      %2376 = vmatprep.subr.mxu0 0.0
      %2377 = vmatpush1.msra.mxu0 0.0
      %2378 = vmatprep.subr.mxu0 0.0
      %2379 = vmatpush1.msra.mxu0 0.0
      %2380 = vmatprep.subr.mxu0 0.0
      %2381 = vmatpush1.msra.mxu0 0.0
      %2382 = vmatprep.subr.mxu0 0.0
      %2383 = vmatpush1.msra.mxu0 0.0
      %2384 = vmatprep.subr.mxu0 0.0
      %2385 = vmatpush1.msra.mxu0 0.0
      %2386 = vmatprep.subr.mxu0 0.0
      %2387 = vmatpush1.msra.mxu0 0.0
      %2388 = vmatprep.subr.mxu0 0.0
      %2389 = vmatpush1.msra.mxu0 0.0
      %2390 = vmatprep.subr.mxu0 0.0
      %2391 = vmatpush1.msra.mxu0 0.0
      %2392 = vmatprep.subr.mxu0 0.0
      %2393 = vmatpush1.msra.mxu0 0.0
      %2394 = vmatprep.subr.mxu0 0.0
      %2395 = vmatpush1.msra.mxu0 0.0
      %2396 = vmatprep.subr.mxu0 0.0
      %2397 = vmatpush1.msra.mxu0 0.0
      %2398 = vmatprep.subr.mxu0 0.0
      %2399 = vmatpush1.msra.mxu0 0.0
      %2400 = vmatprep.subr.mxu0 0.0
      %2401 = vmatpush1.msra.mxu0 0.0
      %2402 = vmatprep.subr.mxu0 0.0
      %2403 = vmatpush1.msra.mxu0 0.0
      %2404 = vmatprep.subr.mxu0 0.0
      %2405 = vmatpush1.msra.mxu0 0.0
      %2406 = vmatprep.subr.mxu0 0.0
      %2407 = vmatpush1.msra.mxu0 0.0
      %2408 = vmatprep.subr.mxu0 0.0
      %2409 = vmatpush1.msra.mxu0 0.0
      %2410 = vmatprep.subr.mxu0 0.0
      %2411 = vmatpush1.msra.mxu0 0.0
      %2412 = vmatprep.subr.mxu0 0.0
      %2413 = vmatpush1.msra.mxu0 0.0
      %2414 = vmatprep.subr.mxu0 0.0
      %2415 = vmatpush1.msra.mxu0 0.0
      %2416 = vmatprep.subr.mxu0 0.0
      %2417 = vmatpush1.msra.mxu0 0.0
      %2418 = vmatprep.subr.mxu0 0.0
      %2419 = vmatpush1.msra.mxu0 0.0
      %2420 = vmatprep.subr.mxu0 0.0
      %2421 = vmatpush1.msra.mxu0 0.0
      %2422 = vmatprep.subr.mxu0 0.0
      %2423 = vmatpush1.msra.mxu0 0.0
      %2424 = vmatprep.subr.mxu0 0.0
      %2425 = vmatpush1.msra.mxu0 0.0
      %2426 = vmatprep.subr.mxu0 0.0
      %2427 = vmatpush1.msra.mxu0 0.0
      %2428 = vmatprep.subr.mxu0 0.0
      %2429 = vmatpush1.msra.mxu0 0.0
      %2430 = vmatprep.mubr.f32.mxu0 0.0
      %2431 = vmatmul.mubr.f32.gmra.mrb[0].mxu0 %v2175
      %v2432 = vpop.f32.mrb[0].mxu0
      %v2433 = vadd.f32 %v2173, %v2432
      %v2434 = vpop.f32.mrb[0].mxu0
      %2435 = vmatprep.mubr.f32.mxu0 0.0
      %2436 = vmatmul.mubr.f32.gmra.mrb[0].mxu0 %v2178
      %v2437 = vpop.f32.mrb[0].mxu0
      %v2438 = vadd.f32 %v2173, %v2437
      %v2439 = vpop.f32.mrb[0].mxu0
      %2440 = vmatprep.mubr.f32.mxu0 0.0
      %2441 = vmatmul.mubr.f32.gmra.mrb[0].mxu0 %v2181
      %v2442 = vpop.f32.mrb[0].mxu0
      %v2443 = vadd.f32 %v2173, %v2442
      %v2444 = vpop.f32.mrb[0].mxu0
      %2445 = vmatprep.mubr.f32.mxu0 0.0
      %2446 = vmatmul.mubr.f32.gmra.mrb[0].mxu0 %v2184
      %v2447 = vpop.f32.mrb[0].mxu0
      %v2448 = vadd.f32 %v2173, %v2447
      %v2449 = vpop.f32.mrb[0].mxu0
      %2450 = vmatprep.mubr.f32.mxu0 0.0
      %2451 = vmatmul.mubr.f32.gmra.mrb[0].mxu0 %v2187
      %v2452 = vpop.f32.mrb[0].mxu0
      %v2453 = vadd.f32 %v2173, %v2452
      %v2454 = vpop.f32.mrb[0].mxu0
      %2455 = vmatprep.mubr.f32.mxu0 0.0
      %2456 = vmatmul.mubr.f32.gmra.mrb[0].mxu0 %v2190
      %v2457 = vpop.f32.mrb[0].mxu0
      %v2458 = vadd.f32 %v2173, %v2457
      %v2459 = vpop.f32.mrb[0].mxu0
      %2460 = vmatprep.mubr.f32.mxu0 0.0
      %2461 = vmatmul.mubr.f32.gmra.mrb[0].mxu0 %v2193
      %v2462 = vpop.f32.mrb[0].mxu0
      %v2463 = vadd.f32 %v2173, %v2462
      %v2464 = vpop.f32.mrb[0].mxu0
      %2465 = vmatprep.mubr.f32.mxu0 0.0
      %2466 = vmatmul.mubr.f32.gmra.mrb[0].mxu0 %v2196
      %v2467 = vpop.f32.mrb[0].mxu0
      %v2468 = vadd.f32 %v2173, %v2467
      %v2469 = vpop.f32.mrb[0].mxu0
      %2470 = vmatprep.mubr.f32.mxu0 0.0
      %2471 = vmatmul.mubr.f32.gmra.mrb[0].mxu0 %v2199
      %v2472 = vpop.f32.mrb[0].mxu0
      %v2473 = vadd.f32 %v2173, %v2472
      %v2474 = vpop.f32.mrb[0].mxu0
      %2475 = vmatprep.mubr.f32.mxu0 0.0
      %2476 = vmatmul.mubr.f32.gmra.mrb[0].mxu0 %v2202
      %v2477 = vpop.f32.mrb[0].mxu0
      %v2478 = vadd.f32 %v2173, %v2477
      %v2479 = vpop.f32.mrb[0].mxu0
      %2480 = vmatprep.mubr.f32.mxu0 0.0
      %2481 = vmatmul.mubr.f32.gmra.mrb[0].mxu0 %v2205
      %v2482 = vpop.f32.mrb[0].mxu0
      %v2483 = vadd.f32 %v2173, %v2482
      %v2484 = vpop.f32.mrb[0].mxu0
      %2485 = vmatprep.mubr.f32.mxu0 0.0
      %2486 = vmatmul.mubr.f32.gmra.mrb[0].mxu0 %v2208
      %v2487 = vpop.f32.mrb[0].mxu0
      %v2488 = vadd.f32 %v2173, %v2487
      %v2489 = vpop.f32.mrb[0].mxu0
      %2490 = vmatprep.mubr.f32.mxu0 0.0
      %2491 = vmatmul.mubr.f32.gmra.mrb[0].mxu0 %v2211
      %v2492 = vpop.f32.mrb[0].mxu0
      %v2493 = vadd.f32 %v2173, %v2492
      %v2494 = vpop.f32.mrb[0].mxu0
      %2495 = vmatprep.mubr.f32.mxu0 0.0
      %2496 = vmatmul.mubr.f32.gmra.mrb[0].mxu0 %v2214
      %v2497 = vpop.f32.mrb[0].mxu0
      %v2498 = vadd.f32 %v2173, %v2497
      %v2499 = vpop.f32.mrb[0].mxu0
      %2500 = vmatprep.mubr.f32.mxu0 0.0
      %2501 = vmatmul.mubr.f32.gmra.mrb[0].mxu0 %v2217
      %v2502 = vpop.f32.mrb[0].mxu0
      %v2503 = vadd.f32 %v2173, %v2502
      %v2504 = vpop.f32.mrb[0].mxu0
      %2505 = vmatprep.mubr.f32.mxu0 0.0
      %2506 = vmatmul.mubr.f32.gmra.mrb[0].mxu0 %v2220
      %v2507 = vpop.f32.mrb[0].mxu0
      %v2508 = vadd.f32 %v2173, %v2507
      %v2509 = vpop.f32.mrb[0].mxu0
      %2510 = vmatprep.mubr.f32.mxu0 0.0
      %2511 = vmatmul.mubr.f32.gmra.mrb[0].mxu0 %v2223
      %v2512 = vpop.f32.mrb[0].mxu0
      %v2513 = vadd.f32 %v2173, %v2512
      %v2514 = vpop.f32.mrb[0].mxu0
      %2515 = vmatprep.mubr.f32.mxu0 0.0
      %2516 = vmatmul.mubr.f32.gmra.mrb[0].mxu0 %v2226
      %v2517 = vpop.f32.mrb[0].mxu0
      %v2518 = vadd.f32 %v2173, %v2517
      %v2519 = vpop.f32.mrb[0].mxu0
      %2520 = vmatprep.mubr.f32.mxu0 0.0
      %2521 = vmatmul.mubr.f32.gmra.mrb[0].mxu0 %v2229
      %v2522 = vpop.f32.mrb[0].mxu0
      %v2523 = vadd.f32 %v2173, %v2522
      %v2524 = vpop.f32.mrb[0].mxu0
      %2525 = vmatprep.mubr.f32.mxu0 0.0
      %2526 = vmatmul.mubr.f32.gmra.mrb[0].mxu0 %v2232
      %v2527 = vpop.f32.mrb[0].mxu0
      %v2528 = vadd.f32 %v2173, %v2527
      %v2529 = vpop.f32.mrb[0].mxu0
      %2530 = vmatprep.mubr.f32.mxu0 0.0
      %2531 = vmatmul.mubr.f32.gmra.mrb[0].mxu0 %v2235
      %v2532 = vpop.f32.mrb[0].mxu0
      %v2533 = vadd.f32 %v2173, %v2532
      %v2534 = vpop.f32.mrb[0].mxu0
      %2535 = vmatprep.mubr.f32.mxu0 0.0
      %2536 = vmatmul.mubr.f32.gmra.mrb[0].mxu0 %v2238
      %v2537 = vpop.f32.mrb[0].mxu0
      %v2538 = vadd.f32 %v2173, %v2537
      %v2539 = vpop.f32.mrb[0].mxu0
      %2540 = vmatprep.mubr.f32.mxu0 0.0
      %2541 = vmatmul.mubr.f32.gmra.mrb[0].mxu0 %v2241
      %v2542 = vpop.f32.mrb[0].mxu0
      %v2543 = vadd.f32 %v2173, %v2542
      %v2544 = vpop.f32.mrb[0].mxu0
      %2545 = vmatprep.mubr.f32.mxu0 0.0
      %2546 = vmatmul.mubr.f32.gmra.mrb[0].mxu0 %v2244
      %v2547 = vpop.f32.mrb[0].mxu0
      %v2548 = vadd.f32 %v2173, %v2547
      %v2549 = vpop.f32.mrb[0].mxu0
      %2550 = vmatprep.mubr.f32.mxu0 0.0
      %2551 = vmatmul.mubr.f32.gmra.mrb[0].mxu0 %v2247
      %v2552 = vpop.f32.mrb[0].mxu0
      %v2553 = vadd.f32 %v2173, %v2552
      %v2554 = vpop.f32.mrb[0].mxu0
      %2555 = vmatprep.mubr.f32.mxu0 0.0
      %2556 = vmatmul.mubr.f32.gmra.mrb[0].mxu0 %v2250
      %v2557 = vpop.f32.mrb[0].mxu0
      %v2558 = vadd.f32 %v2173, %v2557
      %v2559 = vpop.f32.mrb[0].mxu0
      %2560 = vmatprep.mubr.f32.mxu0 0.0
      %2561 = vmatmul.mubr.f32.gmra.mrb[0].mxu0 %v2253
      %v2562 = vpop.f32.mrb[0].mxu0
      %v2563 = vadd.f32 %v2173, %v2562
      %v2564 = vpop.f32.mrb[0].mxu0
      %2565 = vmatprep.mubr.f32.mxu0 0.0
      %2566 = vmatmul.mubr.f32.gmra.mrb[0].mxu0 %v2256
      %v2567 = vpop.f32.mrb[0].mxu0
      %v2568 = vadd.f32 %v2173, %v2567
      %v2569 = vpop.f32.mrb[0].mxu0
      %2570 = vmatprep.mubr.f32.mxu0 0.0
      %2571 = vmatmul.mubr.f32.gmra.mrb[0].mxu0 %v2259
      %v2572 = vpop.f32.mrb[0].mxu0
      %v2573 = vadd.f32 %v2173, %v2572
      %v2574 = vpop.f32.mrb[0].mxu0
      %2575 = vmatprep.mubr.f32.mxu0 0.0
      %2576 = vmatmul.mubr.f32.gmra.mrb[0].mxu0 %v2262
      %v2577 = vpop.f32.mrb[0].mxu0
      %v2578 = vadd.f32 %v2173, %v2577
      %v2579 = vpop.f32.mrb[0].mxu0
      %2580 = vmatprep.mubr.f32.mxu0 0.0
      %2581 = vmatmul.mubr.f32.gmra.mrb[0].mxu0 %v2265
      %v2582 = vpop.f32.mrb[0].mxu0
      %v2583 = vadd.f32 %v2173, %v2582
      %v2584 = vpop.f32.mrb[0].mxu0
      %2585 = vmatprep.mubr.f32.mxu0 0.0
      %2586 = vmatmul.mubr.f32.gmra.mrb[0].mxu0 %v2268
      %v2587 = vpop.f32.mrb[0].mxu0
      %v2588 = vadd.f32 %v2173, %v2587
      %v2589 = vpop.f32.mrb[0].mxu0
      %2590 = vmatprep.mubr.f32.mxu0 0.0
      %2591 = vmatmul.mubr.f32.gmra.mrb[0].mxu0 %v2271
      %v2592 = vpop.f32.mrb[0].mxu0
      %v2593 = vadd.f32 %v2173, %v2592
      %v2594 = vpop.f32.mrb[0].mxu0
      %2595 = vmatprep.mubr.f32.mxu0 0.0
      %2596 = vmatmul.mubr.f32.gmra.mrb[0].mxu0 %v2274
      %v2597 = vpop.f32.mrb[0].mxu0
      %v2598 = vadd.f32 %v2173, %v2597
      %v2599 = vpop.f32.mrb[0].mxu0
      %2600 = vmatprep.mubr.f32.mxu0 0.0
      %2601 = vmatmul.mubr.f32.gmra.mrb[0].mxu0 %v2277
      %v2602 = vpop.f32.mrb[0].mxu0
      %v2603 = vadd.f32 %v2173, %v2602
      %v2604 = vpop.f32.mrb[0].mxu0
      %2605 = vmatprep.mubr.f32.mxu0 0.0
      %2606 = vmatmul.mubr.f32.gmra.mrb[0].mxu0 %v2280
      %v2607 = vpop.f32.mrb[0].mxu0
      %v2608 = vadd.f32 %v2173, %v2607
      %v2609 = vpop.f32.mrb[0].mxu0
      %2610 = vmatprep.mubr.f32.mxu0 0.0
      %2611 = vmatmul.mubr.f32.gmra.mrb[0].mxu0 %v2283
      %v2612 = vpop.f32.mrb[0].mxu0
      %v2613 = vadd.f32 %v2173, %v2612
      %v2614 = vpop.f32.mrb[0].mxu0
      %2615 = vmatprep.mubr.f32.mxu0 0.0
      %2616 = vmatmul.mubr.f32.gmra.mrb[0].mxu0 %v2286
      %v2617 = vpop.f32.mrb[0].mxu0
      %v2618 = vadd.f32 %v2173, %v2617
      %v2619 = vpop.f32.mrb[0].mxu0
      %2620 = vmatprep.mubr.f32.mxu0 0.0
      %2621 = vmatmul.mubr.f32.gmra.mrb[0].mxu0 %v2289
      %v2622 = vpop.f32.mrb[0].mxu0
      %v2623 = vadd.f32 %v2173, %v2622
      %v2624 = vpop.f32.mrb[0].mxu0
      %2625 = vmatprep.mubr.f32.mxu0 0.0
      %2626 = vmatmul.mubr.f32.gmra.mrb[0].mxu0 %v2292
      %v2627 = vpop.f32.mrb[0].mxu0
      %v2628 = vadd.f32 %v2173, %v2627
      %v2629 = vpop.f32.mrb[0].mxu0
      %2630 = vmatprep.mubr.f32.mxu0 0.0
      %2631 = vmatmul.mubr.f32.gmra.mrb[0].mxu0 %v2295
      %v2632 = vpop.f32.mrb[0].mxu0
      %v2633 = vadd.f32 %v2173, %v2632
      %v2634 = vpop.f32.mrb[0].mxu0
      %2635 = vmatprep.mubr.f32.mxu0 0.0
      %2636 = vmatmul.mubr.f32.gmra.mrb[0].mxu0 %v2298
      %v2637 = vpop.f32.mrb[0].mxu0
      %v2638 = vadd.f32 %v2173, %v2637
      %v2639 = vpop.f32.mrb[0].mxu0
      %2640 = vmatprep.mubr.f32.mxu0 0.0
      %2641 = vmatmul.mubr.f32.gmra.mrb[0].mxu0 %v2301
      %v2642 = vpop.f32.mrb[0].mxu0
      %v2643 = vadd.f32 %v2173, %v2642
      %v2644 = vpop.f32.mrb[0].mxu0
      %2645 = vmatprep.mubr.f32.mxu0 0.0
      %2646 = vmatmul.mubr.f32.gmra.mrb[0].mxu0 %v2304
      %v2647 = vpop.f32.mrb[0].mxu0
      %v2648 = vadd.f32 %v2173, %v2647
      %v2649 = vpop.f32.mrb[0].mxu0
      %2650 = vmatprep.mubr.f32.mxu0 0.0
      %2651 = vmatmul.mubr.f32.gmra.mrb[0].mxu0 %v2307
      %v2652 = vpop.f32.mrb[0].mxu0
      %v2653 = vadd.f32 %v2173, %v2652
      %v2654 = vpop.f32.mrb[0].mxu0
      %2655 = vmatprep.mubr.f32.mxu0 0.0
      %2656 = vmatmul.mubr.f32.gmra.mrb[0].mxu0 %v2310
      %v2657 = vpop.f32.mrb[0].mxu0
      %v2658 = vadd.f32 %v2173, %v2657
      %v2659 = vpop.f32.mrb[0].mxu0
      %2660 = vmatprep.mubr.f32.mxu0 0.0
      %2661 = vmatmul.mubr.f32.gmra.mrb[0].mxu0 %v2313
      %v2662 = vpop.f32.mrb[0].mxu0
      %v2663 = vadd.f32 %v2173, %v2662
      %v2664 = vpop.f32.mrb[0].mxu0
      %2665 = vmatprep.mubr.f32.mxu0 0.0
      %2666 = vmatmul.mubr.f32.gmra.mrb[0].mxu0 %v2316
      %v2667 = vpop.f32.mrb[0].mxu0
      %v2668 = vadd.f32 %v2173, %v2667
      %v2669 = vpop.f32.mrb[0].mxu0
      %2670 = vmatprep.mubr.f32.mxu0 0.0
      %2671 = vmatmul.mubr.f32.gmra.mrb[0].mxu0 %v2319
      %v2672 = vpop.f32.mrb[0].mxu0
      %v2673 = vadd.f32 %v2173, %v2672
      %v2674 = vpop.f32.mrb[0].mxu0
      %2675 = vmatprep.mubr.f32.mxu0 0.0
      %2676 = vmatmul.mubr.f32.gmra.mrb[0].mxu0 %v2322
      %v2677 = vpop.f32.mrb[0].mxu0
      %v2678 = vadd.f32 %v2173, %v2677
      %v2679 = vpop.f32.mrb[0].mxu0
      %2680 = vmatprep.mubr.f32.mxu0 0.0
      %2681 = vmatmul.mubr.f32.gmra.mrb[0].mxu0 %v2325
      %v2682 = vpop.f32.mrb[0].mxu0
      %v2683 = vadd.f32 %v2173, %v2682
      %v2684 = vpop.f32.mrb[0].mxu0
      %2685 = vmatprep.mubr.f32.mxu0 0.0
      %2686 = vmatmul.mubr.f32.gmra.mrb[0].mxu0 %v2328
      %v2687 = vpop.f32.mrb[0].mxu0
      %v2688 = vadd.f32 %v2173, %v2687
      %v2689 = vpop.f32.mrb[0].mxu0
      %2690 = vmatprep.mubr.f32.mxu0 0.0
      %2691 = vmatmul.mubr.f32.gmra.mrb[0].mxu0 %v2331
      %v2692 = vpop.f32.mrb[0].mxu0
      %v2693 = vadd.f32 %v2173, %v2692
      %v2694 = vpop.f32.mrb[0].mxu0
      %2695 = vmatprep.mubr.f32.mxu0 0.0
      %2696 = vmatmul.mubr.f32.gmra.mrb[0].mxu0 %v2334
      %v2697 = vpop.f32.mrb[0].mxu0
      %v2698 = vadd.f32 %v2173, %v2697
      %v2699 = vpop.f32.mrb[0].mxu0
      %2700 = vmatprep.mubr.f32.mxu0 0.0
      %2701 = vmatmul.mubr.f32.gmra.mrb[0].mxu0 %v2337
      %v2702 = vpop.f32.mrb[0].mxu0
      %v2703 = vadd.f32 %v2173, %v2702
      %v2704 = vpop.f32.mrb[0].mxu0
      %2705 = vmatprep.mubr.f32.mxu0 0.0
      %2706 = vmatmul.mubr.f32.gmra.mrb[0].mxu0 %v2340
      %v2707 = vpop.f32.mrb[0].mxu0
      %v2708 = vadd.f32 %v2173, %v2707
      %v2709 = vpop.f32.mrb[0].mxu0
      %2710 = vmatprep.mubr.f32.mxu0 0.0
      %2711 = vmatmul.mubr.f32.gmra.mrb[0].mxu0 %v2343
      %v2712 = vpop.f32.mrb[0].mxu0
      %v2713 = vadd.f32 %v2173, %v2712
      %v2714 = vpop.f32.mrb[0].mxu0
      %2715 = vmatprep.mubr.f32.mxu0 0.0
      %2716 = vmatmul.mubr.f32.gmra.mrb[0].mxu0 %v2346
      %v2717 = vpop.f32.mrb[0].mxu0
      %v2718 = vadd.f32 %v2173, %v2717
      %v2719 = vpop.f32.mrb[0].mxu0
      %2720 = vmatprep.mubr.f32.mxu0 0.0
      %2721 = vmatmul.mubr.f32.gmra.mrb[0].mxu0 %v2349
      %v2722 = vpop.f32.mrb[0].mxu0
      %v2723 = vadd.f32 %v2173, %v2722
      %v2724 = vpop.f32.mrb[0].mxu0
      %2725 = vmatprep.mubr.f32.mxu0 0.0
      %2726 = vmatmul.mubr.f32.gmra.mrb[0].mxu0 %v2352
      %v2727 = vpop.f32.mrb[0].mxu0
      %v2728 = vadd.f32 %v2173, %v2727
      %v2729 = vpop.f32.mrb[0].mxu0
      %2730 = vmatprep.mubr.f32.mxu0 0.0
      %2731 = vmatmul.mubr.f32.gmra.mrb[0].mxu0 %v2355
      %v2732 = vpop.f32.mrb[0].mxu0
      %v2733 = vadd.f32 %v2173, %v2732
      %v2734 = vpop.f32.mrb[0].mxu0
      %2735 = vmatprep.mubr.f32.mxu0 0.0
      %2736 = vmatmul.mubr.f32.gmra.mrb[0].mxu0 %v2358
      %v2737 = vpop.f32.mrb[0].mxu0
      %v2738 = vadd.f32 %v2173, %v2737
      %v2739 = vpop.f32.mrb[0].mxu0
      %2740 = vmatprep.mubr.f32.mxu0 0.0
      %2741 = vmatmul.mubr.f32.gmra.mrb[0].mxu0 %v2361
      %v2742 = vpop.f32.mrb[0].mxu0
      %v2743 = vadd.f32 %v2173, %v2742
      %v2744 = vpop.f32.mrb[0].mxu0
      %2745 = vmatprep.mubr.f32.mxu0 0.0
      %2746 = vmatmul.mubr.f32.gmra.mrb[0].mxu0 %v2364
      %v2747 = vpop.f32.mrb[0].mxu0
      %v2748 = vadd.f32 %v2173, %v2747
      %v2749 = vpop.f32.mrb[0].mxu0
      %2750 = vdwg.mxu0
      %v2751 = vmax.f32 %v2433, 0.0
      %v2752 = vmax.f32 %v2438, 0.0
      %v2753 = vmax.f32 %v2443, 0.0
      %v2754 = vmax.f32 %v2448, 0.0
      %v2755 = vmax.f32 %v2453, 0.0
      %v2756 = vmax.f32 %v2458, 0.0
      %v2757 = vmax.f32 %v2463, 0.0
      %v2758 = vmax.f32 %v2468, 0.0
      %v2759 = vmax.f32 %v2473, 0.0
      %v2760 = vmax.f32 %v2478, 0.0
      %v2761 = vmax.f32 %v2483, 0.0
      %v2762 = vmax.f32 %v2488, 0.0
      %v2763 = vmax.f32 %v2493, 0.0
      %v2764 = vmax.f32 %v2498, 0.0
      %v2765 = vmax.f32 %v2503, 0.0
      %v2766 = vmax.f32 %v2508, 0.0
      %v2767 = vmax.f32 %v2513, 0.0
      %v2768 = vmax.f32 %v2518, 0.0
      %v2769 = vmax.f32 %v2523, 0.0
      %v2770 = vmax.f32 %v2528, 0.0
      %v2771 = vmax.f32 %v2533, 0.0
      %v2772 = vmax.f32 %v2538, 0.0
      %v2773 = vmax.f32 %v2543, 0.0
      %v2774 = vmax.f32 %v2548, 0.0
      %v2775 = vmax.f32 %v2553, 0.0
      %v2776 = vmax.f32 %v2558, 0.0
      %v2777 = vmax.f32 %v2563, 0.0
      %v2778 = vmax.f32 %v2568, 0.0
      %v2779 = vmax.f32 %v2573, 0.0
      %v2780 = vmax.f32 %v2578, 0.0
      %v2781 = vmax.f32 %v2583, 0.0
      %v2782 = vmax.f32 %v2588, 0.0
      %v2783 = vmax.f32 %v2593, 0.0
      %v2784 = vmax.f32 %v2598, 0.0
      %v2785 = vmax.f32 %v2603, 0.0
      %v2786 = vmax.f32 %v2608, 0.0
      %v2787 = vmax.f32 %v2613, 0.0
      %v2788 = vmax.f32 %v2618, 0.0
      %v2789 = vmax.f32 %v2623, 0.0
      %v2790 = vmax.f32 %v2628, 0.0
      %v2791 = vmax.f32 %v2633, 0.0
      %v2792 = vmax.f32 %v2638, 0.0
      %v2793 = vmax.f32 %v2643, 0.0
      %v2794 = vmax.f32 %v2648, 0.0
      %v2795 = vmax.f32 %v2653, 0.0
      %v2796 = vmax.f32 %v2658, 0.0
      %v2797 = vmax.f32 %v2663, 0.0
      %v2798 = vmax.f32 %v2668, 0.0
      %v2799 = vmax.f32 %v2673, 0.0
      %v2800 = vmax.f32 %v2678, 0.0
      %v2801 = vmax.f32 %v2683, 0.0
      %v2802 = vmax.f32 %v2688, 0.0
      %v2803 = vmax.f32 %v2693, 0.0
      %v2804 = vmax.f32 %v2698, 0.0
      %v2805 = vmax.f32 %v2703, 0.0
      %v2806 = vmax.f32 %v2708, 0.0
      %v2807 = vmax.f32 %v2713, 0.0
      %v2808 = vmax.f32 %v2718, 0.0
      %v2809 = vmax.f32 %v2723, 0.0
      %v2810 = vmax.f32 %v2728, 0.0
      %v2811 = vmax.f32 %v2733, 0.0
      %v2812 = vmax.f32 %v2738, 0.0
      %v2813 = vmax.f32 %v2743, 0.0
      %v2814 = vmax.f32 %v2748, 0.0
      %vm2815 = vcmask 293888
      %2816 = vst.msk [vmem:[%s145] sm:$0xff] %vm2815, %v2751
      %2817 = vst.msk [vmem:[%s145 + $0x8] sm:$0xff] %vm2815, %v2752
      %2818 = vst.msk [vmem:[%s145 + $0x10] sm:$0xff] %vm2815, %v2753
      %2819 = vst.msk [vmem:[%s145 + $0x18] sm:$0xff] %vm2815, %v2754
      %2820 = vst.msk [vmem:[%s145 + $0x20] sm:$0xff] %vm2815, %v2755
      %2821 = vst.msk [vmem:[%s145 + $0x28] sm:$0xff] %vm2815, %v2756
      %2822 = vst.msk [vmem:[%s145 + $0x30] sm:$0xff] %vm2815, %v2757
      %2823 = vst.msk [vmem:[%s145 + $0x38] sm:$0xff] %vm2815, %v2758
      %2824 = vst.msk [vmem:[%s145 + $0x40] sm:$0xff] %vm2815, %v2759
      %2825 = vst.msk [vmem:[%s145 + $0x48] sm:$0xff] %vm2815, %v2760
      %2826 = vst.msk [vmem:[%s145 + $0x50] sm:$0xff] %vm2815, %v2761
      %2827 = vst.msk [vmem:[%s145 + $0x58] sm:$0xff] %vm2815, %v2762
      %2828 = vst.msk [vmem:[%s145 + $0x60] sm:$0xff] %vm2815, %v2763
      %2829 = vst.msk [vmem:[%s145 + $0x68] sm:$0xff] %vm2815, %v2764
      %2830 = vst.msk [vmem:[%s145 + $0x70] sm:$0xff] %vm2815, %v2765
      %2831 = vst.msk [vmem:[%s145 + $0x78] sm:$0xff] %vm2815, %v2766
      %2832 = vst.msk [vmem:[%s145 + $0x80] sm:$0xff] %vm2815, %v2767
      %2833 = vst.msk [vmem:[%s145 + $0x88] sm:$0xff] %vm2815, %v2768
      %2834 = vst.msk [vmem:[%s145 + $0x90] sm:$0xff] %vm2815, %v2769
      %2835 = vst.msk [vmem:[%s145 + $0x98] sm:$0xff] %vm2815, %v2770
      %2836 = vst.msk [vmem:[%s145 + $0xa0] sm:$0xff] %vm2815, %v2771
      %2837 = vst.msk [vmem:[%s145 + $0xa8] sm:$0xff] %vm2815, %v2772
      %2838 = vst.msk [vmem:[%s145 + $0xb0] sm:$0xff] %vm2815, %v2773
      %2839 = vst.msk [vmem:[%s145 + $0xb8] sm:$0xff] %vm2815, %v2774
      %2840 = vst.msk [vmem:[%s145 + $0xc0] sm:$0xff] %vm2815, %v2775
      %2841 = vst.msk [vmem:[%s145 + $0xc8] sm:$0xff] %vm2815, %v2776
      %2842 = vst.msk [vmem:[%s145 + $0xd0] sm:$0xff] %vm2815, %v2777
      %2843 = vst.msk [vmem:[%s145 + $0xd8] sm:$0xff] %vm2815, %v2778
      %2844 = vst.msk [vmem:[%s145 + $0xe0] sm:$0xff] %vm2815, %v2779
      %2845 = vst.msk [vmem:[%s145 + $0xe8] sm:$0xff] %vm2815, %v2780
      %2846 = vst.msk [vmem:[%s145 + $0xf0] sm:$0xff] %vm2815, %v2781
      %2847 = vst.msk [vmem:[%s145 + $0xf8] sm:$0xff] %vm2815, %v2782
      %2848 = vst.msk [vmem:[%s145 + $0x100] sm:$0xff] %vm2815, %v2783
      %2849 = vst.msk [vmem:[%s145 + $0x108] sm:$0xff] %vm2815, %v2784
      %2850 = vst.msk [vmem:[%s145 + $0x110] sm:$0xff] %vm2815, %v2785
      %2851 = vst.msk [vmem:[%s145 + $0x118] sm:$0xff] %vm2815, %v2786
      %2852 = vst.msk [vmem:[%s145 + $0x120] sm:$0xff] %vm2815, %v2787
      %2853 = vst.msk [vmem:[%s145 + $0x128] sm:$0xff] %vm2815, %v2788
      %2854 = vst.msk [vmem:[%s145 + $0x130] sm:$0xff] %vm2815, %v2789
      %2855 = vst.msk [vmem:[%s145 + $0x138] sm:$0xff] %vm2815, %v2790
      %2856 = vst.msk [vmem:[%s145 + $0x140] sm:$0xff] %vm2815, %v2791
      %2857 = vst.msk [vmem:[%s145 + $0x148] sm:$0xff] %vm2815, %v2792
      %2858 = vst.msk [vmem:[%s145 + $0x150] sm:$0xff] %vm2815, %v2793
      %2859 = vst.msk [vmem:[%s145 + $0x158] sm:$0xff] %vm2815, %v2794
      %2860 = vst.msk [vmem:[%s145 + $0x160] sm:$0xff] %vm2815, %v2795
      %2861 = vst.msk [vmem:[%s145 + $0x168] sm:$0xff] %vm2815, %v2796
      %2862 = vst.msk [vmem:[%s145 + $0x170] sm:$0xff] %vm2815, %v2797
      %2863 = vst.msk [vmem:[%s145 + $0x178] sm:$0xff] %vm2815, %v2798
      %2864 = vst.msk [vmem:[%s145 + $0x180] sm:$0xff] %vm2815, %v2799
      %2865 = vst.msk [vmem:[%s145 + $0x188] sm:$0xff] %vm2815, %v2800
      %2866 = vst.msk [vmem:[%s145 + $0x190] sm:$0xff] %vm2815, %v2801
      %2867 = vst.msk [vmem:[%s145 + $0x198] sm:$0xff] %vm2815, %v2802
      %2868 = vst.msk [vmem:[%s145 + $0x1a0] sm:$0xff] %vm2815, %v2803
      %2869 = vst.msk [vmem:[%s145 + $0x1a8] sm:$0xff] %vm2815, %v2804
      %2870 = vst.msk [vmem:[%s145 + $0x1b0] sm:$0xff] %vm2815, %v2805
      %2871 = vst.msk [vmem:[%s145 + $0x1b8] sm:$0xff] %vm2815, %v2806
      %2872 = vst.msk [vmem:[%s145 + $0x1c0] sm:$0xff] %vm2815, %v2807
      %2873 = vst.msk [vmem:[%s145 + $0x1c8] sm:$0xff] %vm2815, %v2808
      %2874 = vst.msk [vmem:[%s145 + $0x1d0] sm:$0xff] %vm2815, %v2809
      %2875 = vst.msk [vmem:[%s145 + $0x1d8] sm:$0xff] %vm2815, %v2810
      %2876 = vst.msk [vmem:[%s145 + $0x1e0] sm:$0xff] %vm2815, %v2811
      %2877 = vst.msk [vmem:[%s145 + $0x1e8] sm:$0xff] %vm2815, %v2812
      %2878 = vst.msk [vmem:[%s145 + $0x1f0] sm:$0xff] %vm2815, %v2813
      %2879 = vst.msk [vmem:[%s145 + $0x1f8] sm:$0xff] %vm2815, %v2814
      %s2880 = smul.u32 64, %s13
      %p2881 = scmp.lt.s32.totalorder %s2880, 127
      %s2882 = scalar_select %p2881, %s2880, 127
      %s2883 = smul.addr %s2882, 8
      %s2884 = scalar_lea.vmem %s2, %s2883
      // Predicated region
      $region29: #{dnn_forward.1} parent=27 // pred_check
        %p2885 = pneg %p78
      $region30: #{dnn_forward.1} parent=27 // pred_check_branch
        %2887 = sbr.rel (%p2885) target = $region32
      $region31: #{dnn_forward.1} parent=27 // pred_region
        %s2888 = smul.u32 64, %s13
      $region32: #{dnn_forward.1} parent=27 // pred_fallthru
        _
    $region28: #{dnn_forward.1} parent=5 // pred_fallthru
      _
    %p2889 = scmp.le.s32.totalorder 2, %s8
    // Predicated region
    $region33: #{dnn_forward.1} parent=5 // pred_check
      %p2890 = pneg %p2889
    $region34: #{dnn_forward.1} parent=5 // pred_check_branch
      %2892 = sbr.rel (%p2890) target = $region36
    $region35: #{dnn_forward.1} parent=5 // pred_region
      %s2893 = ssub.s32 %s8, 2
      // Predicated region
      $region37: #{dnn_forward.1} parent=35 // pred_check
        %p2894 = pneg %p84
      $region38: #{dnn_forward.1} parent=35 // pred_check_branch
        %2896 = sbr.rel (%p2894) target = $region40
      $region39: #{dnn_forward.1} parent=35 // pred_region
        %s2897 = smul.u32 64, %s14
        %p2898 = scmp.lt.s32.totalorder %s2897, 127
        %s2899 = scalar_select %p2898, %s2897, 127
        %s2900 = smul.addr %s2899, 8
        %s2901 = scalar_lea.vmem %s2, %s2900
      $region40: #{dnn_forward.1} parent=35 // pred_fallthru
        _
    $region36: #{dnn_forward.1} parent=5 // pred_fallthru
      _
  $region6: #{dnn_forward.1} parent=0 // loop_footer
    %s12 = sadd.s32 1, %s8
  $region7: #{dnn_forward.1} parent=0 // loop_footer_branch
    %7 = sbr.rel target = $region3
  $region8: #{dnn_forward.1} parent=0 // loop_exit
    _

</llo_original>
